<compile_context>
chip_gen: v5e
topology: v5e:2x2
jax: 0.10.0
libtpu: 0.0.40
codegen_flags: <defaults>
</compile_context>

<pallas_src>
import functools

import jax
import jax.numpy as jnp
from jax.experimental import pallas as pl
from jax.experimental.pallas import tpu as pltpu

HIDDEN = 64
INPUT_SIZE = 1


def lstm_predictor_kernel(x_ref, wih0_ref, b0_ref, wbig_ref, b1_ref,
                          wfc_ref, bfc_ref, out_ref):
    H = HIDDEN
    Bb, T = x_ref.shape

    def cell(gates, c_prev):
        # permuted gate order [i, f, o, g]; sigmoid via tanh so the contiguous
        # 3H block costs ONE EUP pass (VALU mul/add absorb the rest).
        sig = 0.5 * jnp.tanh(0.5 * gates[:, :3 * H]) + 0.5
        i = sig[:, 0 * H:1 * H]
        f = sig[:, 1 * H:2 * H]
        o = sig[:, 2 * H:3 * H]
        g = jnp.tanh(gates[:, 3 * H:])
        c_new = f * c_prev + i * g
        h_new = o * jnp.tanh(c_new)
        return h_new, c_new

    zeros_h = jnp.zeros((Bb, H), jnp.float32)
    h1, c1, h2, c2 = zeros_h, zeros_h, zeros_h, zeros_h
    r0 = None  # h1(t-1) @ w_hh0^T, produced by the previous step's fused matmul

    # TODO(synk): static unroll keeps per-step slices static and the state in
    # vregs; for long sequences (T >~ 128) move time onto an "arbitrary" grid
    # axis with h/c/r0 in VMEM scratch to bound code size and VMEM.
    # TODO(synk): for block_b >= 16, interleave two independent half-batch
    # sub-tiles per step to hide the serial MXU->EUP->VPU chain latency.
    for t in range(T):
        # ---- layer 0: NO matmul.  input_size == 1 -> broadcast scale of the
        # single weight row; bias folded; recurrent part comes from r0.
        g0 = x_ref[:, t:t + 1] * wih0_ref[...] + b0_ref[...]
        if t > 0:
            g0 = g0 + r0
        h1, c1 = cell(g0, c1)

        # ---- fused matmul: (Bb, 2H) @ (2H, 8H)
        #   cols [0, 4H)  -> layer-1 gates for step t   (h1(t), h2(t-1) rows)
        #   cols [4H, 8H) -> h1(t) @ w_hh0^T = recurrent part of g0(t+1)
        big = jnp.dot(jnp.concatenate([h1, h2], axis=-1), wbig_ref[...],
                      preferred_element_type=jnp.float32)
        g1 = big[:, :4 * H] + b1_ref[...]
        r0 = big[:, 4 * H:]
        h2, c2 = cell(g1, c2)

    # fc head (N=1) as a VPU multiply + lane reduction, plus residual.
    pred = jnp.sum(h2 * wfc_ref[...], axis=-1, keepdims=True) + bfc_ref[...]
    out_ref[...] = x_ref[:, T - 1:T] + pred


@functools.partial(jax.jit, static_argnames=("block_b",))
def lstm_predictor(x, params, block_b=None):
    """x: (B, T, 1) float32, batch-first like the PyTorch module."""
    B, T, D = x.shape
    assert D == INPUT_SIZE
    wih0, b0, wbig, b1, wfc, bfc = params
    H = HIDDEN

    # One batch block on single-TC chips when it fits; cap at 128 rows so two+
    # blocks engage both TensorCores on v7x for large batches.
    Bp8 = ((B + 7) // 8) * 8
    if block_b is None:
        block_b = min(Bp8, 128)
    block_b = ((block_b + 7) // 8) * 8
    n_blocks = max(1, (Bp8 + block_b - 1) // block_b)
    Bp = n_blocks * block_b

    # lane-dense x slab: batch on sublanes, time on lanes (no 128x lane-1 pad)
    x2 = jnp.zeros((Bp, T), jnp.float32).at[:B, :].set(x[..., 0].astype(jnp.float32))

    # explicit VMEM budget: double-buffered x block + weights + out + headroom
    def rup(v, m):
        return (v + m - 1) // m * m

    est = (2 * block_b * rup(T, 128) * 4                       # x block x2 bufs
           + 2 * (3 * 8 * rup(4 * H, 128)                      # wih0, b0, b1
                  + 2 * H * rup(8 * H, 128)                    # W_big
                  + 8 * 128 + 8 * 128) * 4                     # wfc, bfc
           + 2 * block_b * 128 * 4)                            # out block
    vmem_limit = int(min(64 << 20, max(8 << 20, 2 * est + (2 << 20))))

    flops = int(2 * T * Bp * (2 * H) * (8 * H) + 2 * Bp * H)
    transcendentals = int(T * Bp * 10 * H)
    bytes_accessed = int(4 * (Bp * T + Bp + 3 * 4 * H + 2 * H * 8 * H + H + 1))

    out = pl.pallas_call(
        lstm_predictor_kernel,
        out_shape=jax.ShapeDtypeStruct((Bp, 1), jnp.float32),
        grid_spec=pltpu.PrefetchScalarGridSpec(
            num_scalar_prefetch=0,
            grid=(n_blocks,),
            in_specs=[
                pl.BlockSpec((block_b, T), lambda i: (i, 0)),      # x (Bp, T)
                pl.BlockSpec((1, 4 * H), lambda i: (0, 0)),        # w_ih0^T (perm)
                pl.BlockSpec((1, 4 * H), lambda i: (0, 0)),        # b0
                pl.BlockSpec((2 * H, 8 * H), lambda i: (0, 0)),    # W_big
                pl.BlockSpec((1, 4 * H), lambda i: (0, 0)),        # b1
                pl.BlockSpec((1, H), lambda i: (0, 0)),            # fc weight row
                pl.BlockSpec((1, 1), lambda i: (0, 0)),            # fc bias
            ],
            out_specs=pl.BlockSpec((block_b, 1), lambda i: (i, 0)),
        ),
        compiler_params=pltpu.CompilerParams(
            dimension_semantics=("parallel",),   # batch blocks -> both TCs on v7x
            vmem_limit_bytes=vmem_limit,
        ),
        cost_estimate=pl.CostEstimate(
            flops=flops,
            transcendentals=transcendentals,
            bytes_accessed=bytes_accessed,
        ),
    )(x2, wih0, b0, wbig, b1, wfc, bfc)
    return out[:B]


def init_params(key):
    """Raw PyTorch-style weights (nn.LSTM / nn.Linear init, fc.bias = 0.1)."""
    H = HIDDEN
    k = 1.0 / jnp.sqrt(jnp.float32(H))
    keys = jax.random.split(key, 9)

    def u(kk, shape):
        return jax.random.uniform(kk, shape, jnp.float32, minval=-k, maxval=k)

    return dict(
        w_ih0=u(keys[0], (4 * H, INPUT_SIZE)), w_hh0=u(keys[1], (4 * H, H)),
        b_ih0=u(keys[2], (4 * H,)), b_hh0=u(keys[3], (4 * H,)),
        w_ih1=u(keys[4], (4 * H, H)), w_hh1=u(keys[5], (4 * H, H)),
        b_ih1=u(keys[6], (4 * H,)), b_hh1=u(keys[7], (4 * H,)),
        w_fc=u(keys[8], (1, H)), b_fc=jnp.full((1, 1), 0.1, jnp.float32),
    )


def pack_params(raw):
    """Pack for the kernel: pre-transpose to (in, 4H), fold b_ih+b_hh, permute
    gate order [i,f,g,o] -> [i,f,o,g], and build the fused (2H, 8H) W_big."""
    H = HIDDEN
    perm = jnp.concatenate([jnp.arange(0, H), jnp.arange(H, 2 * H),
                            jnp.arange(3 * H, 4 * H), jnp.arange(2 * H, 3 * H)])

    def pg(m):
        return jnp.take(m, perm, axis=-1)

    wih0 = pg(raw["w_ih0"].T)                                   # (1, 4H)
    b0 = pg((raw["b_ih0"] + raw["b_hh0"])[None, :])             # (1, 4H)
    b1 = pg((raw["b_ih1"] + raw["b_hh1"])[None, :])             # (1, 4H)
    wbig = jnp.zeros((2 * H, 8 * H), jnp.float32)
    wbig = wbig.at[:H, :4 * H].set(pg(raw["w_ih1"].T))          # h1(t)   -> g1(t)
    wbig = wbig.at[H:, :4 * H].set(pg(raw["w_hh1"].T))          # h2(t-1) -> g1(t)
    wbig = wbig.at[:H, 4 * H:].set(pg(raw["w_hh0"].T))          # h1(t)   -> g0(t+1)
    return (wih0, b0, wbig, b1, raw["w_fc"], raw["b_fc"])


def lstm_predictor_ref(x, raw):
    """Pure-JAX reference implementing the PyTorch eval-mode forward."""
    H = HIDDEN
    B, T, _ = x.shape
    h1 = c1 = h2 = c2 = jnp.zeros((B, H), jnp.float32)

    def cell(gates, c):
        i, f, g, o = jnp.split(gates, 4, axis=-1)   # PyTorch order [i,f,g,o]
        i, f, o, g = jax.nn.sigmoid(i), jax.nn.sigmoid(f), jax.nn.sigmoid(o), jnp.tanh(g)
        c_new = f * c + i * g
        return o * jnp.tanh(c_new), c_new

    for t in range(T):
        xt = x[:, t, :]
        g0 = xt @ raw["w_ih0"].T + h1 @ raw["w_hh0"].T + raw["b_ih0"] + raw["b_hh0"]
        h1, c1 = cell(g0, c1)
        g1 = h1 @ raw["w_ih1"].T + h2 @ raw["w_hh1"].T + raw["b_ih1"] + raw["b_hh1"]
        h2, c2 = cell(g1, c2)
    pred = h2 @ raw["w_fc"].T + raw["b_fc"]
    return x[:, -1, :] + pred


if __name__ == "__main__":
    key = jax.random.PRNGKey(0)
    k_params, k_x = jax.random.split(key)

    B, T = 2, 8
    raw = init_params(k_params)
    params = pack_params(raw)
    x = jax.random.normal(k_x, (B, T, INPUT_SIZE), jnp.float32)   # (batch, seq, 1)

    out = lstm_predictor(x, params)
    jax.block_until_ready(out)
    assert out.shape == (B, 1)

    ref = lstm_predictor_ref(x, raw)
    assert jnp.allclose(out, ref, atol=5e-3, rtol=5e-3), (out, ref)

    print("KERNEL_OK")
</pallas_src>

<mosaic_0001>
module attributes {stable_mosaic.version = 11 : i64} {
  func.func @lstm_predictor_kernel(%arg0: i32, %arg1: memref<8x8xf32, #tpu.memory_space<vmem>>, %arg2: memref<1x256xf32, #tpu.memory_space<vmem>>, %arg3: memref<1x256xf32, #tpu.memory_space<vmem>>, %arg4: memref<128x512xf32, #tpu.memory_space<vmem>>, %arg5: memref<1x256xf32, #tpu.memory_space<vmem>>, %arg6: memref<1x64xf32, #tpu.memory_space<vmem>>, %arg7: memref<1x1xf32, #tpu.memory_space<vmem>>, %arg8: memref<8x1xf32, #tpu.memory_space<vmem>>) attributes {dimension_semantics = [#tpu.dimension_semantics<parallel>], iteration_bounds = array<i64: 1>, scalar_prefetch = 0 : i64, scratch_operands = 0 : i64, tpu.core_type = #tpu.core_type<tc>, window_params = [{transform_indices = @transform_0, window_bounds = array<i64: 8, 8>}, {pipeline_mode = #tpu.pipeline_mode<synchronous>, transform_indices = @transform_1, window_bounds = array<i64: 1, 256>}, {pipeline_mode = #tpu.pipeline_mode<synchronous>, transform_indices = @transform_2, window_bounds = array<i64: 1, 256>}, {pipeline_mode = #tpu.pipeline_mode<synchronous>, transform_indices = @transform_3, window_bounds = array<i64: 128, 512>}, {pipeline_mode = #tpu.pipeline_mode<synchronous>, transform_indices = @transform_4, window_bounds = array<i64: 1, 256>}, {pipeline_mode = #tpu.pipeline_mode<synchronous>, transform_indices = @transform_5, window_bounds = array<i64: 1, 64>}, {pipeline_mode = #tpu.pipeline_mode<synchronous>, transform_indices = @transform_6, window_bounds = array<i64: 1, 1>}, {transform_indices = @transform_7, window_bounds = array<i64: 8, 1>}]} {
    %cst = arith.constant 0.000000e+00 : f32
    %0 = vector.broadcast %cst : f32 to vector<8x64xf32>
    %c0 = arith.constant 0 : index
    %c0_0 = arith.constant 0 : index
    %1 = vector.load %arg1[%c0, %c0_0] : memref<8x8xf32, #tpu.memory_space<vmem>>, vector<8x1xf32>
    %c0_1 = arith.constant 0 : index
    %c0_2 = arith.constant 0 : index
    %2 = vector.load %arg2[%c0_1, %c0_2] : memref<1x256xf32, #tpu.memory_space<vmem>>, vector<1x256xf32>
    %3 = vector.broadcast %1 : vector<8x1xf32> to vector<8x256xf32>
    %4 = vector.broadcast %2 : vector<1x256xf32> to vector<8x256xf32>
    %5 = arith.mulf %3, %4 : vector<8x256xf32>
    %c0_3 = arith.constant 0 : index
    %c0_4 = arith.constant 0 : index
    %6 = vector.load %arg3[%c0_3, %c0_4] : memref<1x256xf32, #tpu.memory_space<vmem>>, vector<1x256xf32>
    %7 = vector.broadcast %6 : vector<1x256xf32> to vector<8x256xf32>
    %8 = arith.addf %5, %7 : vector<8x256xf32>
    %9 = vector.extract_strided_slice %8 {offsets = [0, 0], sizes = [8, 192], strides = [1, 1]} : vector<8x256xf32> to vector<8x192xf32>
    %cst_5 = arith.constant 5.000000e-01 : f32
    %10 = vector.broadcast %cst_5 : f32 to vector<8x192xf32>
    %11 = arith.mulf %10, %9 : vector<8x192xf32>
    %12 = math.tanh %11 : vector<8x192xf32>
    %cst_6 = arith.constant 5.000000e-01 : f32
    %13 = vector.broadcast %cst_6 : f32 to vector<8x192xf32>
    %14 = arith.mulf %13, %12 : vector<8x192xf32>
    %cst_7 = arith.constant 5.000000e-01 : f32
    %15 = vector.broadcast %cst_7 : f32 to vector<8x192xf32>
    %16 = arith.addf %14, %15 : vector<8x192xf32>
    %17 = vector.extract_strided_slice %16 {offsets = [0, 0], sizes = [8, 64], strides = [1, 1]} : vector<8x192xf32> to vector<8x64xf32>
    %18 = vector.extract_strided_slice %16 {offsets = [0, 64], sizes = [8, 64], strides = [1, 1]} : vector<8x192xf32> to vector<8x64xf32>
    %19 = vector.extract_strided_slice %16 {offsets = [0, 128], sizes = [8, 64], strides = [1, 1]} : vector<8x192xf32> to vector<8x64xf32>
    %20 = vector.extract_strided_slice %8 {offsets = [0, 192], sizes = [8, 64], strides = [1, 1]} : vector<8x256xf32> to vector<8x64xf32>
    %21 = math.tanh %20 : vector<8x64xf32>
    %22 = arith.mulf %18, %0 : vector<8x64xf32>
    %23 = arith.mulf %17, %21 : vector<8x64xf32>
    %24 = arith.addf %22, %23 : vector<8x64xf32>
    %25 = math.tanh %24 : vector<8x64xf32>
    %26 = arith.mulf %19, %25 : vector<8x64xf32>
    %27 = tpu.concatenate %26, %0 in 1 : vector<8x64xf32>, vector<8x64xf32> -> vector<8x128xf32>
    %c0_8 = arith.constant 0 : index
    %c0_9 = arith.constant 0 : index
    %28 = vector.load %arg4[%c0_8, %c0_9] : memref<128x512xf32, #tpu.memory_space<vmem>>, vector<128x512xf32>
    %cst_10 = arith.constant dense<0.000000e+00> : vector<8x512xf32>
    %29 = tpu.matmul %27, %28, %cst_10 {dimension_numbers = #tpu.dot_dimension_numbers<[1], [0], [0], [1], [0, 0, 1, 1], [], []>} : vector<8x128xf32>, vector<128x512xf32>, vector<8x512xf32> -> vector<8x512xf32>
    %30 = vector.extract_strided_slice %29 {offsets = [0, 0], sizes = [8, 256], strides = [1, 1]} : vector<8x512xf32> to vector<8x256xf32>
    %c0_11 = arith.constant 0 : index
    %c0_12 = arith.constant 0 : index
    %31 = vector.load %arg5[%c0_11, %c0_12] : memref<1x256xf32, #tpu.memory_space<vmem>>, vector<1x256xf32>
    %32 = vector.broadcast %31 : vector<1x256xf32> to vector<8x256xf32>
    %33 = arith.addf %30, %32 : vector<8x256xf32>
    %34 = vector.extract_strided_slice %29 {offsets = [0, 256], sizes = [8, 256], strides = [1, 1]} : vector<8x512xf32> to vector<8x256xf32>
    %35 = vector.extract_strided_slice %33 {offsets = [0, 0], sizes = [8, 192], strides = [1, 1]} : vector<8x256xf32> to vector<8x192xf32>
    %cst_13 = arith.constant 5.000000e-01 : f32
    %36 = vector.broadcast %cst_13 : f32 to vector<8x192xf32>
    %37 = arith.mulf %36, %35 : vector<8x192xf32>
    %38 = math.tanh %37 : vector<8x192xf32>
    %cst_14 = arith.constant 5.000000e-01 : f32
    %39 = vector.broadcast %cst_14 : f32 to vector<8x192xf32>
    %40 = arith.mulf %39, %38 : vector<8x192xf32>
    %cst_15 = arith.constant 5.000000e-01 : f32
    %41 = vector.broadcast %cst_15 : f32 to vector<8x192xf32>
    %42 = arith.addf %40, %41 : vector<8x192xf32>
    %43 = vector.extract_strided_slice %42 {offsets = [0, 0], sizes = [8, 64], strides = [1, 1]} : vector<8x192xf32> to vector<8x64xf32>
    %44 = vector.extract_strided_slice %42 {offsets = [0, 64], sizes = [8, 64], strides = [1, 1]} : vector<8x192xf32> to vector<8x64xf32>
    %45 = vector.extract_strided_slice %42 {offsets = [0, 128], sizes = [8, 64], strides = [1, 1]} : vector<8x192xf32> to vector<8x64xf32>
    %46 = vector.extract_strided_slice %33 {offsets = [0, 192], sizes = [8, 64], strides = [1, 1]} : vector<8x256xf32> to vector<8x64xf32>
    %47 = math.tanh %46 : vector<8x64xf32>
    %48 = arith.mulf %44, %0 : vector<8x64xf32>
    %49 = arith.mulf %43, %47 : vector<8x64xf32>
    %50 = arith.addf %48, %49 : vector<8x64xf32>
    %51 = math.tanh %50 : vector<8x64xf32>
    %52 = arith.mulf %45, %51 : vector<8x64xf32>
    %c0_16 = arith.constant 0 : index
    %c1 = arith.constant 1 : index
    %53 = vector.load %arg1[%c0_16, %c1] : memref<8x8xf32, #tpu.memory_space<vmem>>, vector<8x1xf32>
    %c0_17 = arith.constant 0 : index
    %c0_18 = arith.constant 0 : index
    %54 = vector.load %arg2[%c0_17, %c0_18] : memref<1x256xf32, #tpu.memory_space<vmem>>, vector<1x256xf32>
    %55 = vector.broadcast %53 : vector<8x1xf32> to vector<8x256xf32>
    %56 = vector.broadcast %54 : vector<1x256xf32> to vector<8x256xf32>
    %57 = arith.mulf %55, %56 : vector<8x256xf32>
    %c0_19 = arith.constant 0 : index
    %c0_20 = arith.constant 0 : index
    %58 = vector.load %arg3[%c0_19, %c0_20] : memref<1x256xf32, #tpu.memory_space<vmem>>, vector<1x256xf32>
    %59 = vector.broadcast %58 : vector<1x256xf32> to vector<8x256xf32>
    %60 = arith.addf %57, %59 : vector<8x256xf32>
    %61 = arith.addf %60, %34 : vector<8x256xf32>
    %62 = vector.extract_strided_slice %61 {offsets = [0, 0], sizes = [8, 192], strides = [1, 1]} : vector<8x256xf32> to vector<8x192xf32>
    %cst_21 = arith.constant 5.000000e-01 : f32
    %63 = vector.broadcast %cst_21 : f32 to vector<8x192xf32>
    %64 = arith.mulf %63, %62 : vector<8x192xf32>
    %65 = math.tanh %64 : vector<8x192xf32>
    %cst_22 = arith.constant 5.000000e-01 : f32
    %66 = vector.broadcast %cst_22 : f32 to vector<8x192xf32>
    %67 = arith.mulf %66, %65 : vector<8x192xf32>
    %cst_23 = arith.constant 5.000000e-01 : f32
    %68 = vector.broadcast %cst_23 : f32 to vector<8x192xf32>
    %69 = arith.addf %67, %68 : vector<8x192xf32>
    %70 = vector.extract_strided_slice %69 {offsets = [0, 0], sizes = [8, 64], strides = [1, 1]} : vector<8x192xf32> to vector<8x64xf32>
    %71 = vector.extract_strided_slice %69 {offsets = [0, 64], sizes = [8, 64], strides = [1, 1]} : vector<8x192xf32> to vector<8x64xf32>
    %72 = vector.extract_strided_slice %69 {offsets = [0, 128], sizes = [8, 64], strides = [1, 1]} : vector<8x192xf32> to vector<8x64xf32>
    %73 = vector.extract_strided_slice %61 {offsets = [0, 192], sizes = [8, 64], strides = [1, 1]} : vector<8x256xf32> to vector<8x64xf32>
    %74 = math.tanh %73 : vector<8x64xf32>
    %75 = arith.mulf %71, %24 : vector<8x64xf32>
    %76 = arith.mulf %70, %74 : vector<8x64xf32>
    %77 = arith.addf %75, %76 : vector<8x64xf32>
    %78 = math.tanh %77 : vector<8x64xf32>
    %79 = arith.mulf %72, %78 : vector<8x64xf32>
    %80 = tpu.concatenate %79, %52 in 1 : vector<8x64xf32>, vector<8x64xf32> -> vector<8x128xf32>
    %c0_24 = arith.constant 0 : index
    %c0_25 = arith.constant 0 : index
    %81 = vector.load %arg4[%c0_24, %c0_25] : memref<128x512xf32, #tpu.memory_space<vmem>>, vector<128x512xf32>
    %cst_26 = arith.constant dense<0.000000e+00> : vector<8x512xf32>
    %82 = tpu.matmul %80, %81, %cst_26 {dimension_numbers = #tpu.dot_dimension_numbers<[1], [0], [0], [1], [0, 0, 1, 1], [], []>} : vector<8x128xf32>, vector<128x512xf32>, vector<8x512xf32> -> vector<8x512xf32>
    %83 = vector.extract_strided_slice %82 {offsets = [0, 0], sizes = [8, 256], strides = [1, 1]} : vector<8x512xf32> to vector<8x256xf32>
    %c0_27 = arith.constant 0 : index
    %c0_28 = arith.constant 0 : index
    %84 = vector.load %arg5[%c0_27, %c0_28] : memref<1x256xf32, #tpu.memory_space<vmem>>, vector<1x256xf32>
    %85 = vector.broadcast %84 : vector<1x256xf32> to vector<8x256xf32>
    %86 = arith.addf %83, %85 : vector<8x256xf32>
    %87 = vector.extract_strided_slice %82 {offsets = [0, 256], sizes = [8, 256], strides = [1, 1]} : vector<8x512xf32> to vector<8x256xf32>
    %88 = vector.extract_strided_slice %86 {offsets = [0, 0], sizes = [8, 192], strides = [1, 1]} : vector<8x256xf32> to vector<8x192xf32>
    %cst_29 = arith.constant 5.000000e-01 : f32
    %89 = vector.broadcast %cst_29 : f32 to vector<8x192xf32>
    %90 = arith.mulf %89, %88 : vector<8x192xf32>
    %91 = math.tanh %90 : vector<8x192xf32>
    %cst_30 = arith.constant 5.000000e-01 : f32
    %92 = vector.broadcast %cst_30 : f32 to vector<8x192xf32>
    %93 = arith.mulf %92, %91 : vector<8x192xf32>
    %cst_31 = arith.constant 5.000000e-01 : f32
    %94 = vector.broadcast %cst_31 : f32 to vector<8x192xf32>
    %95 = arith.addf %93, %94 : vector<8x192xf32>
    %96 = vector.extract_strided_slice %95 {offsets = [0, 0], sizes = [8, 64], strides = [1, 1]} : vector<8x192xf32> to vector<8x64xf32>
    %97 = vector.extract_strided_slice %95 {offsets = [0, 64], sizes = [8, 64], strides = [1, 1]} : vector<8x192xf32> to vector<8x64xf32>
    %98 = vector.extract_strided_slice %95 {offsets = [0, 128], sizes = [8, 64], strides = [1, 1]} : vector<8x192xf32> to vector<8x64xf32>
    %99 = vector.extract_strided_slice %86 {offsets = [0, 192], sizes = [8, 64], strides = [1, 1]} : vector<8x256xf32> to vector<8x64xf32>
    %100 = math.tanh %99 : vector<8x64xf32>
    %101 = arith.mulf %97, %50 : vector<8x64xf32>
    %102 = arith.mulf %96, %100 : vector<8x64xf32>
    %103 = arith.addf %101, %102 : vector<8x64xf32>
    %104 = math.tanh %103 : vector<8x64xf32>
    %105 = arith.mulf %98, %104 : vector<8x64xf32>
    %c0_32 = arith.constant 0 : index
    %c2 = arith.constant 2 : index
    %106 = vector.load %arg1[%c0_32, %c2] : memref<8x8xf32, #tpu.memory_space<vmem>>, vector<8x1xf32>
    %c0_33 = arith.constant 0 : index
    %c0_34 = arith.constant 0 : index
    %107 = vector.load %arg2[%c0_33, %c0_34] : memref<1x256xf32, #tpu.memory_space<vmem>>, vector<1x256xf32>
    %108 = vector.broadcast %106 : vector<8x1xf32> to vector<8x256xf32>
    %109 = vector.broadcast %107 : vector<1x256xf32> to vector<8x256xf32>
    %110 = arith.mulf %108, %109 : vector<8x256xf32>
    %c0_35 = arith.constant 0 : index
    %c0_36 = arith.constant 0 : index
    %111 = vector.load %arg3[%c0_35, %c0_36] : memref<1x256xf32, #tpu.memory_space<vmem>>, vector<1x256xf32>
    %112 = vector.broadcast %111 : vector<1x256xf32> to vector<8x256xf32>
    %113 = arith.addf %110, %112 : vector<8x256xf32>
    %114 = arith.addf %113, %87 : vector<8x256xf32>
    %115 = vector.extract_strided_slice %114 {offsets = [0, 0], sizes = [8, 192], strides = [1, 1]} : vector<8x256xf32> to vector<8x192xf32>
    %cst_37 = arith.constant 5.000000e-01 : f32
    %116 = vector.broadcast %cst_37 : f32 to vector<8x192xf32>
    %117 = arith.mulf %116, %115 : vector<8x192xf32>
    %118 = math.tanh %117 : vector<8x192xf32>
    %cst_38 = arith.constant 5.000000e-01 : f32
    %119 = vector.broadcast %cst_38 : f32 to vector<8x192xf32>
    %120 = arith.mulf %119, %118 : vector<8x192xf32>
    %cst_39 = arith.constant 5.000000e-01 : f32
    %121 = vector.broadcast %cst_39 : f32 to vector<8x192xf32>
    %122 = arith.addf %120, %121 : vector<8x192xf32>
    %123 = vector.extract_strided_slice %122 {offsets = [0, 0], sizes = [8, 64], strides = [1, 1]} : vector<8x192xf32> to vector<8x64xf32>
    %124 = vector.extract_strided_slice %122 {offsets = [0, 64], sizes = [8, 64], strides = [1, 1]} : vector<8x192xf32> to vector<8x64xf32>
    %125 = vector.extract_strided_slice %122 {offsets = [0, 128], sizes = [8, 64], strides = [1, 1]} : vector<8x192xf32> to vector<8x64xf32>
    %126 = vector.extract_strided_slice %114 {offsets = [0, 192], sizes = [8, 64], strides = [1, 1]} : vector<8x256xf32> to vector<8x64xf32>
    %127 = math.tanh %126 : vector<8x64xf32>
    %128 = arith.mulf %124, %77 : vector<8x64xf32>
    %129 = arith.mulf %123, %127 : vector<8x64xf32>
    %130 = arith.addf %128, %129 : vector<8x64xf32>
    %131 = math.tanh %130 : vector<8x64xf32>
    %132 = arith.mulf %125, %131 : vector<8x64xf32>
    %133 = tpu.concatenate %132, %105 in 1 : vector<8x64xf32>, vector<8x64xf32> -> vector<8x128xf32>
    %c0_40 = arith.constant 0 : index
    %c0_41 = arith.constant 0 : index
    %134 = vector.load %arg4[%c0_40, %c0_41] : memref<128x512xf32, #tpu.memory_space<vmem>>, vector<128x512xf32>
    %cst_42 = arith.constant dense<0.000000e+00> : vector<8x512xf32>
    %135 = tpu.matmul %133, %134, %cst_42 {dimension_numbers = #tpu.dot_dimension_numbers<[1], [0], [0], [1], [0, 0, 1, 1], [], []>} : vector<8x128xf32>, vector<128x512xf32>, vector<8x512xf32> -> vector<8x512xf32>
    %136 = vector.extract_strided_slice %135 {offsets = [0, 0], sizes = [8, 256], strides = [1, 1]} : vector<8x512xf32> to vector<8x256xf32>
    %c0_43 = arith.constant 0 : index
    %c0_44 = arith.constant 0 : index
    %137 = vector.load %arg5[%c0_43, %c0_44] : memref<1x256xf32, #tpu.memory_space<vmem>>, vector<1x256xf32>
    %138 = vector.broadcast %137 : vector<1x256xf32> to vector<8x256xf32>
    %139 = arith.addf %136, %138 : vector<8x256xf32>
    %140 = vector.extract_strided_slice %135 {offsets = [0, 256], sizes = [8, 256], strides = [1, 1]} : vector<8x512xf32> to vector<8x256xf32>
    %141 = vector.extract_strided_slice %139 {offsets = [0, 0], sizes = [8, 192], strides = [1, 1]} : vector<8x256xf32> to vector<8x192xf32>
    %cst_45 = arith.constant 5.000000e-01 : f32
    %142 = vector.broadcast %cst_45 : f32 to vector<8x192xf32>
    %143 = arith.mulf %142, %141 : vector<8x192xf32>
    %144 = math.tanh %143 : vector<8x192xf32>
    %cst_46 = arith.constant 5.000000e-01 : f32
    %145 = vector.broadcast %cst_46 : f32 to vector<8x192xf32>
    %146 = arith.mulf %145, %144 : vector<8x192xf32>
    %cst_47 = arith.constant 5.000000e-01 : f32
    %147 = vector.broadcast %cst_47 : f32 to vector<8x192xf32>
    %148 = arith.addf %146, %147 : vector<8x192xf32>
    %149 = vector.extract_strided_slice %148 {offsets = [0, 0], sizes = [8, 64], strides = [1, 1]} : vector<8x192xf32> to vector<8x64xf32>
    %150 = vector.extract_strided_slice %148 {offsets = [0, 64], sizes = [8, 64], strides = [1, 1]} : vector<8x192xf32> to vector<8x64xf32>
    %151 = vector.extract_strided_slice %148 {offsets = [0, 128], sizes = [8, 64], strides = [1, 1]} : vector<8x192xf32> to vector<8x64xf32>
    %152 = vector.extract_strided_slice %139 {offsets = [0, 192], sizes = [8, 64], strides = [1, 1]} : vector<8x256xf32> to vector<8x64xf32>
    %153 = math.tanh %152 : vector<8x64xf32>
    %154 = arith.mulf %150, %103 : vector<8x64xf32>
    %155 = arith.mulf %149, %153 : vector<8x64xf32>
    %156 = arith.addf %154, %155 : vector<8x64xf32>
    %157 = math.tanh %156 : vector<8x64xf32>
    %158 = arith.mulf %151, %157 : vector<8x64xf32>
    %c0_48 = arith.constant 0 : index
    %c3 = arith.constant 3 : index
    %159 = vector.load %arg1[%c0_48, %c3] : memref<8x8xf32, #tpu.memory_space<vmem>>, vector<8x1xf32>
    %c0_49 = arith.constant 0 : index
    %c0_50 = arith.constant 0 : index
    %160 = vector.load %arg2[%c0_49, %c0_50] : memref<1x256xf32, #tpu.memory_space<vmem>>, vector<1x256xf32>
    %161 = vector.broadcast %159 : vector<8x1xf32> to vector<8x256xf32>
    %162 = vector.broadcast %160 : vector<1x256xf32> to vector<8x256xf32>
    %163 = arith.mulf %161, %162 : vector<8x256xf32>
    %c0_51 = arith.constant 0 : index
    %c0_52 = arith.constant 0 : index
    %164 = vector.load %arg3[%c0_51, %c0_52] : memref<1x256xf32, #tpu.memory_space<vmem>>, vector<1x256xf32>
    %165 = vector.broadcast %164 : vector<1x256xf32> to vector<8x256xf32>
    %166 = arith.addf %163, %165 : vector<8x256xf32>
    %167 = arith.addf %166, %140 : vector<8x256xf32>
    %168 = vector.extract_strided_slice %167 {offsets = [0, 0], sizes = [8, 192], strides = [1, 1]} : vector<8x256xf32> to vector<8x192xf32>
    %cst_53 = arith.constant 5.000000e-01 : f32
    %169 = vector.broadcast %cst_53 : f32 to vector<8x192xf32>
    %170 = arith.mulf %169, %168 : vector<8x192xf32>
    %171 = math.tanh %170 : vector<8x192xf32>
    %cst_54 = arith.constant 5.000000e-01 : f32
    %172 = vector.broadcast %cst_54 : f32 to vector<8x192xf32>
    %173 = arith.mulf %172, %171 : vector<8x192xf32>
    %cst_55 = arith.constant 5.000000e-01 : f32
    %174 = vector.broadcast %cst_55 : f32 to vector<8x192xf32>
    %175 = arith.addf %173, %174 : vector<8x192xf32>
    %176 = vector.extract_strided_slice %175 {offsets = [0, 0], sizes = [8, 64], strides = [1, 1]} : vector<8x192xf32> to vector<8x64xf32>
    %177 = vector.extract_strided_slice %175 {offsets = [0, 64], sizes = [8, 64], strides = [1, 1]} : vector<8x192xf32> to vector<8x64xf32>
    %178 = vector.extract_strided_slice %175 {offsets = [0, 128], sizes = [8, 64], strides = [1, 1]} : vector<8x192xf32> to vector<8x64xf32>
    %179 = vector.extract_strided_slice %167 {offsets = [0, 192], sizes = [8, 64], strides = [1, 1]} : vector<8x256xf32> to vector<8x64xf32>
    %180 = math.tanh %179 : vector<8x64xf32>
    %181 = arith.mulf %177, %130 : vector<8x64xf32>
    %182 = arith.mulf %176, %180 : vector<8x64xf32>
    %183 = arith.addf %181, %182 : vector<8x64xf32>
    %184 = math.tanh %183 : vector<8x64xf32>
    %185 = arith.mulf %178, %184 : vector<8x64xf32>
    %186 = tpu.concatenate %185, %158 in 1 : vector<8x64xf32>, vector<8x64xf32> -> vector<8x128xf32>
    %c0_56 = arith.constant 0 : index
    %c0_57 = arith.constant 0 : index
    %187 = vector.load %arg4[%c0_56, %c0_57] : memref<128x512xf32, #tpu.memory_space<vmem>>, vector<128x512xf32>
    %cst_58 = arith.constant dense<0.000000e+00> : vector<8x512xf32>
    %188 = tpu.matmul %186, %187, %cst_58 {dimension_numbers = #tpu.dot_dimension_numbers<[1], [0], [0], [1], [0, 0, 1, 1], [], []>} : vector<8x128xf32>, vector<128x512xf32>, vector<8x512xf32> -> vector<8x512xf32>
    %189 = vector.extract_strided_slice %188 {offsets = [0, 0], sizes = [8, 256], strides = [1, 1]} : vector<8x512xf32> to vector<8x256xf32>
    %c0_59 = arith.constant 0 : index
    %c0_60 = arith.constant 0 : index
    %190 = vector.load %arg5[%c0_59, %c0_60] : memref<1x256xf32, #tpu.memory_space<vmem>>, vector<1x256xf32>
    %191 = vector.broadcast %190 : vector<1x256xf32> to vector<8x256xf32>
    %192 = arith.addf %189, %191 : vector<8x256xf32>
    %193 = vector.extract_strided_slice %188 {offsets = [0, 256], sizes = [8, 256], strides = [1, 1]} : vector<8x512xf32> to vector<8x256xf32>
    %194 = vector.extract_strided_slice %192 {offsets = [0, 0], sizes = [8, 192], strides = [1, 1]} : vector<8x256xf32> to vector<8x192xf32>
    %cst_61 = arith.constant 5.000000e-01 : f32
    %195 = vector.broadcast %cst_61 : f32 to vector<8x192xf32>
    %196 = arith.mulf %195, %194 : vector<8x192xf32>
    %197 = math.tanh %196 : vector<8x192xf32>
    %cst_62 = arith.constant 5.000000e-01 : f32
    %198 = vector.broadcast %cst_62 : f32 to vector<8x192xf32>
    %199 = arith.mulf %198, %197 : vector<8x192xf32>
    %cst_63 = arith.constant 5.000000e-01 : f32
    %200 = vector.broadcast %cst_63 : f32 to vector<8x192xf32>
    %201 = arith.addf %199, %200 : vector<8x192xf32>
    %202 = vector.extract_strided_slice %201 {offsets = [0, 0], sizes = [8, 64], strides = [1, 1]} : vector<8x192xf32> to vector<8x64xf32>
    %203 = vector.extract_strided_slice %201 {offsets = [0, 64], sizes = [8, 64], strides = [1, 1]} : vector<8x192xf32> to vector<8x64xf32>
    %204 = vector.extract_strided_slice %201 {offsets = [0, 128], sizes = [8, 64], strides = [1, 1]} : vector<8x192xf32> to vector<8x64xf32>
    %205 = vector.extract_strided_slice %192 {offsets = [0, 192], sizes = [8, 64], strides = [1, 1]} : vector<8x256xf32> to vector<8x64xf32>
    %206 = math.tanh %205 : vector<8x64xf32>
    %207 = arith.mulf %203, %156 : vector<8x64xf32>
    %208 = arith.mulf %202, %206 : vector<8x64xf32>
    %209 = arith.addf %207, %208 : vector<8x64xf32>
    %210 = math.tanh %209 : vector<8x64xf32>
    %211 = arith.mulf %204, %210 : vector<8x64xf32>
    %c0_64 = arith.constant 0 : index
    %c4 = arith.constant 4 : index
    %212 = vector.load %arg1[%c0_64, %c4] : memref<8x8xf32, #tpu.memory_space<vmem>>, vector<8x1xf32>
    %c0_65 = arith.constant 0 : index
    %c0_66 = arith.constant 0 : index
    %213 = vector.load %arg2[%c0_65, %c0_66] : memref<1x256xf32, #tpu.memory_space<vmem>>, vector<1x256xf32>
    %214 = vector.broadcast %212 : vector<8x1xf32> to vector<8x256xf32>
    %215 = vector.broadcast %213 : vector<1x256xf32> to vector<8x256xf32>
    %216 = arith.mulf %214, %215 : vector<8x256xf32>
    %c0_67 = arith.constant 0 : index
    %c0_68 = arith.constant 0 : index
    %217 = vector.load %arg3[%c0_67, %c0_68] : memref<1x256xf32, #tpu.memory_space<vmem>>, vector<1x256xf32>
    %218 = vector.broadcast %217 : vector<1x256xf32> to vector<8x256xf32>
    %219 = arith.addf %216, %218 : vector<8x256xf32>
    %220 = arith.addf %219, %193 : vector<8x256xf32>
    %221 = vector.extract_strided_slice %220 {offsets = [0, 0], sizes = [8, 192], strides = [1, 1]} : vector<8x256xf32> to vector<8x192xf32>
    %cst_69 = arith.constant 5.000000e-01 : f32
    %222 = vector.broadcast %cst_69 : f32 to vector<8x192xf32>
    %223 = arith.mulf %222, %221 : vector<8x192xf32>
    %224 = math.tanh %223 : vector<8x192xf32>
    %cst_70 = arith.constant 5.000000e-01 : f32
    %225 = vector.broadcast %cst_70 : f32 to vector<8x192xf32>
    %226 = arith.mulf %225, %224 : vector<8x192xf32>
    %cst_71 = arith.constant 5.000000e-01 : f32
    %227 = vector.broadcast %cst_71 : f32 to vector<8x192xf32>
    %228 = arith.addf %226, %227 : vector<8x192xf32>
    %229 = vector.extract_strided_slice %228 {offsets = [0, 0], sizes = [8, 64], strides = [1, 1]} : vector<8x192xf32> to vector<8x64xf32>
    %230 = vector.extract_strided_slice %228 {offsets = [0, 64], sizes = [8, 64], strides = [1, 1]} : vector<8x192xf32> to vector<8x64xf32>
    %231 = vector.extract_strided_slice %228 {offsets = [0, 128], sizes = [8, 64], strides = [1, 1]} : vector<8x192xf32> to vector<8x64xf32>
    %232 = vector.extract_strided_slice %220 {offsets = [0, 192], sizes = [8, 64], strides = [1, 1]} : vector<8x256xf32> to vector<8x64xf32>
    %233 = math.tanh %232 : vector<8x64xf32>
    %234 = arith.mulf %230, %183 : vector<8x64xf32>
    %235 = arith.mulf %229, %233 : vector<8x64xf32>
    %236 = arith.addf %234, %235 : vector<8x64xf32>
    %237 = math.tanh %236 : vector<8x64xf32>
    %238 = arith.mulf %231, %237 : vector<8x64xf32>
    %239 = tpu.concatenate %238, %211 in 1 : vector<8x64xf32>, vector<8x64xf32> -> vector<8x128xf32>
    %c0_72 = arith.constant 0 : index
    %c0_73 = arith.constant 0 : index
    %240 = vector.load %arg4[%c0_72, %c0_73] : memref<128x512xf32, #tpu.memory_space<vmem>>, vector<128x512xf32>
    %cst_74 = arith.constant dense<0.000000e+00> : vector<8x512xf32>
    %241 = tpu.matmul %239, %240, %cst_74 {dimension_numbers = #tpu.dot_dimension_numbers<[1], [0], [0], [1], [0, 0, 1, 1], [], []>} : vector<8x128xf32>, vector<128x512xf32>, vector<8x512xf32> -> vector<8x512xf32>
    %242 = vector.extract_strided_slice %241 {offsets = [0, 0], sizes = [8, 256], strides = [1, 1]} : vector<8x512xf32> to vector<8x256xf32>
    %c0_75 = arith.constant 0 : index
    %c0_76 = arith.constant 0 : index
    %243 = vector.load %arg5[%c0_75, %c0_76] : memref<1x256xf32, #tpu.memory_space<vmem>>, vector<1x256xf32>
    %244 = vector.broadcast %243 : vector<1x256xf32> to vector<8x256xf32>
    %245 = arith.addf %242, %244 : vector<8x256xf32>
    %246 = vector.extract_strided_slice %241 {offsets = [0, 256], sizes = [8, 256], strides = [1, 1]} : vector<8x512xf32> to vector<8x256xf32>
    %247 = vector.extract_strided_slice %245 {offsets = [0, 0], sizes = [8, 192], strides = [1, 1]} : vector<8x256xf32> to vector<8x192xf32>
    %cst_77 = arith.constant 5.000000e-01 : f32
    %248 = vector.broadcast %cst_77 : f32 to vector<8x192xf32>
    %249 = arith.mulf %248, %247 : vector<8x192xf32>
    %250 = math.tanh %249 : vector<8x192xf32>
    %cst_78 = arith.constant 5.000000e-01 : f32
    %251 = vector.broadcast %cst_78 : f32 to vector<8x192xf32>
    %252 = arith.mulf %251, %250 : vector<8x192xf32>
    %cst_79 = arith.constant 5.000000e-01 : f32
    %253 = vector.broadcast %cst_79 : f32 to vector<8x192xf32>
    %254 = arith.addf %252, %253 : vector<8x192xf32>
    %255 = vector.extract_strided_slice %254 {offsets = [0, 0], sizes = [8, 64], strides = [1, 1]} : vector<8x192xf32> to vector<8x64xf32>
    %256 = vector.extract_strided_slice %254 {offsets = [0, 64], sizes = [8, 64], strides = [1, 1]} : vector<8x192xf32> to vector<8x64xf32>
    %257 = vector.extract_strided_slice %254 {offsets = [0, 128], sizes = [8, 64], strides = [1, 1]} : vector<8x192xf32> to vector<8x64xf32>
    %258 = vector.extract_strided_slice %245 {offsets = [0, 192], sizes = [8, 64], strides = [1, 1]} : vector<8x256xf32> to vector<8x64xf32>
    %259 = math.tanh %258 : vector<8x64xf32>
    %260 = arith.mulf %256, %209 : vector<8x64xf32>
    %261 = arith.mulf %255, %259 : vector<8x64xf32>
    %262 = arith.addf %260, %261 : vector<8x64xf32>
    %263 = math.tanh %262 : vector<8x64xf32>
    %264 = arith.mulf %257, %263 : vector<8x64xf32>
    %c0_80 = arith.constant 0 : index
    %c5 = arith.constant 5 : index
    %265 = vector.load %arg1[%c0_80, %c5] : memref<8x8xf32, #tpu.memory_space<vmem>>, vector<8x1xf32>
    %c0_81 = arith.constant 0 : index
    %c0_82 = arith.constant 0 : index
    %266 = vector.load %arg2[%c0_81, %c0_82] : memref<1x256xf32, #tpu.memory_space<vmem>>, vector<1x256xf32>
    %267 = vector.broadcast %265 : vector<8x1xf32> to vector<8x256xf32>
    %268 = vector.broadcast %266 : vector<1x256xf32> to vector<8x256xf32>
    %269 = arith.mulf %267, %268 : vector<8x256xf32>
    %c0_83 = arith.constant 0 : index
    %c0_84 = arith.constant 0 : index
    %270 = vector.load %arg3[%c0_83, %c0_84] : memref<1x256xf32, #tpu.memory_space<vmem>>, vector<1x256xf32>
    %271 = vector.broadcast %270 : vector<1x256xf32> to vector<8x256xf32>
    %272 = arith.addf %269, %271 : vector<8x256xf32>
    %273 = arith.addf %272, %246 : vector<8x256xf32>
    %274 = vector.extract_strided_slice %273 {offsets = [0, 0], sizes = [8, 192], strides = [1, 1]} : vector<8x256xf32> to vector<8x192xf32>
    %cst_85 = arith.constant 5.000000e-01 : f32
    %275 = vector.broadcast %cst_85 : f32 to vector<8x192xf32>
    %276 = arith.mulf %275, %274 : vector<8x192xf32>
    %277 = math.tanh %276 : vector<8x192xf32>
    %cst_86 = arith.constant 5.000000e-01 : f32
    %278 = vector.broadcast %cst_86 : f32 to vector<8x192xf32>
    %279 = arith.mulf %278, %277 : vector<8x192xf32>
    %cst_87 = arith.constant 5.000000e-01 : f32
    %280 = vector.broadcast %cst_87 : f32 to vector<8x192xf32>
    %281 = arith.addf %279, %280 : vector<8x192xf32>
    %282 = vector.extract_strided_slice %281 {offsets = [0, 0], sizes = [8, 64], strides = [1, 1]} : vector<8x192xf32> to vector<8x64xf32>
    %283 = vector.extract_strided_slice %281 {offsets = [0, 64], sizes = [8, 64], strides = [1, 1]} : vector<8x192xf32> to vector<8x64xf32>
    %284 = vector.extract_strided_slice %281 {offsets = [0, 128], sizes = [8, 64], strides = [1, 1]} : vector<8x192xf32> to vector<8x64xf32>
    %285 = vector.extract_strided_slice %273 {offsets = [0, 192], sizes = [8, 64], strides = [1, 1]} : vector<8x256xf32> to vector<8x64xf32>
    %286 = math.tanh %285 : vector<8x64xf32>
    %287 = arith.mulf %283, %236 : vector<8x64xf32>
    %288 = arith.mulf %282, %286 : vector<8x64xf32>
    %289 = arith.addf %287, %288 : vector<8x64xf32>
    %290 = math.tanh %289 : vector<8x64xf32>
    %291 = arith.mulf %284, %290 : vector<8x64xf32>
    %292 = tpu.concatenate %291, %264 in 1 : vector<8x64xf32>, vector<8x64xf32> -> vector<8x128xf32>
    %c0_88 = arith.constant 0 : index
    %c0_89 = arith.constant 0 : index
    %293 = vector.load %arg4[%c0_88, %c0_89] : memref<128x512xf32, #tpu.memory_space<vmem>>, vector<128x512xf32>
    %cst_90 = arith.constant dense<0.000000e+00> : vector<8x512xf32>
    %294 = tpu.matmul %292, %293, %cst_90 {dimension_numbers = #tpu.dot_dimension_numbers<[1], [0], [0], [1], [0, 0, 1, 1], [], []>} : vector<8x128xf32>, vector<128x512xf32>, vector<8x512xf32> -> vector<8x512xf32>
    %295 = vector.extract_strided_slice %294 {offsets = [0, 0], sizes = [8, 256], strides = [1, 1]} : vector<8x512xf32> to vector<8x256xf32>
    %c0_91 = arith.constant 0 : index
    %c0_92 = arith.constant 0 : index
    %296 = vector.load %arg5[%c0_91, %c0_92] : memref<1x256xf32, #tpu.memory_space<vmem>>, vector<1x256xf32>
    %297 = vector.broadcast %296 : vector<1x256xf32> to vector<8x256xf32>
    %298 = arith.addf %295, %297 : vector<8x256xf32>
    %299 = vector.extract_strided_slice %294 {offsets = [0, 256], sizes = [8, 256], strides = [1, 1]} : vector<8x512xf32> to vector<8x256xf32>
    %300 = vector.extract_strided_slice %298 {offsets = [0, 0], sizes = [8, 192], strides = [1, 1]} : vector<8x256xf32> to vector<8x192xf32>
    %cst_93 = arith.constant 5.000000e-01 : f32
    %301 = vector.broadcast %cst_93 : f32 to vector<8x192xf32>
    %302 = arith.mulf %301, %300 : vector<8x192xf32>
    %303 = math.tanh %302 : vector<8x192xf32>
    %cst_94 = arith.constant 5.000000e-01 : f32
    %304 = vector.broadcast %cst_94 : f32 to vector<8x192xf32>
    %305 = arith.mulf %304, %303 : vector<8x192xf32>
    %cst_95 = arith.constant 5.000000e-01 : f32
    %306 = vector.broadcast %cst_95 : f32 to vector<8x192xf32>
    %307 = arith.addf %305, %306 : vector<8x192xf32>
    %308 = vector.extract_strided_slice %307 {offsets = [0, 0], sizes = [8, 64], strides = [1, 1]} : vector<8x192xf32> to vector<8x64xf32>
    %309 = vector.extract_strided_slice %307 {offsets = [0, 64], sizes = [8, 64], strides = [1, 1]} : vector<8x192xf32> to vector<8x64xf32>
    %310 = vector.extract_strided_slice %307 {offsets = [0, 128], sizes = [8, 64], strides = [1, 1]} : vector<8x192xf32> to vector<8x64xf32>
    %311 = vector.extract_strided_slice %298 {offsets = [0, 192], sizes = [8, 64], strides = [1, 1]} : vector<8x256xf32> to vector<8x64xf32>
    %312 = math.tanh %311 : vector<8x64xf32>
    %313 = arith.mulf %309, %262 : vector<8x64xf32>
    %314 = arith.mulf %308, %312 : vector<8x64xf32>
    %315 = arith.addf %313, %314 : vector<8x64xf32>
    %316 = math.tanh %315 : vector<8x64xf32>
    %317 = arith.mulf %310, %316 : vector<8x64xf32>
    %c0_96 = arith.constant 0 : index
    %c6 = arith.constant 6 : index
    %318 = vector.load %arg1[%c0_96, %c6] : memref<8x8xf32, #tpu.memory_space<vmem>>, vector<8x1xf32>
    %c0_97 = arith.constant 0 : index
    %c0_98 = arith.constant 0 : index
    %319 = vector.load %arg2[%c0_97, %c0_98] : memref<1x256xf32, #tpu.memory_space<vmem>>, vector<1x256xf32>
    %320 = vector.broadcast %318 : vector<8x1xf32> to vector<8x256xf32>
    %321 = vector.broadcast %319 : vector<1x256xf32> to vector<8x256xf32>
    %322 = arith.mulf %320, %321 : vector<8x256xf32>
    %c0_99 = arith.constant 0 : index
    %c0_100 = arith.constant 0 : index
    %323 = vector.load %arg3[%c0_99, %c0_100] : memref<1x256xf32, #tpu.memory_space<vmem>>, vector<1x256xf32>
    %324 = vector.broadcast %323 : vector<1x256xf32> to vector<8x256xf32>
    %325 = arith.addf %322, %324 : vector<8x256xf32>
    %326 = arith.addf %325, %299 : vector<8x256xf32>
    %327 = vector.extract_strided_slice %326 {offsets = [0, 0], sizes = [8, 192], strides = [1, 1]} : vector<8x256xf32> to vector<8x192xf32>
    %cst_101 = arith.constant 5.000000e-01 : f32
    %328 = vector.broadcast %cst_101 : f32 to vector<8x192xf32>
    %329 = arith.mulf %328, %327 : vector<8x192xf32>
    %330 = math.tanh %329 : vector<8x192xf32>
    %cst_102 = arith.constant 5.000000e-01 : f32
    %331 = vector.broadcast %cst_102 : f32 to vector<8x192xf32>
    %332 = arith.mulf %331, %330 : vector<8x192xf32>
    %cst_103 = arith.constant 5.000000e-01 : f32
    %333 = vector.broadcast %cst_103 : f32 to vector<8x192xf32>
    %334 = arith.addf %332, %333 : vector<8x192xf32>
    %335 = vector.extract_strided_slice %334 {offsets = [0, 0], sizes = [8, 64], strides = [1, 1]} : vector<8x192xf32> to vector<8x64xf32>
    %336 = vector.extract_strided_slice %334 {offsets = [0, 64], sizes = [8, 64], strides = [1, 1]} : vector<8x192xf32> to vector<8x64xf32>
    %337 = vector.extract_strided_slice %334 {offsets = [0, 128], sizes = [8, 64], strides = [1, 1]} : vector<8x192xf32> to vector<8x64xf32>
    %338 = vector.extract_strided_slice %326 {offsets = [0, 192], sizes = [8, 64], strides = [1, 1]} : vector<8x256xf32> to vector<8x64xf32>
    %339 = math.tanh %338 : vector<8x64xf32>
    %340 = arith.mulf %336, %289 : vector<8x64xf32>
    %341 = arith.mulf %335, %339 : vector<8x64xf32>
    %342 = arith.addf %340, %341 : vector<8x64xf32>
    %343 = math.tanh %342 : vector<8x64xf32>
    %344 = arith.mulf %337, %343 : vector<8x64xf32>
    %345 = tpu.concatenate %344, %317 in 1 : vector<8x64xf32>, vector<8x64xf32> -> vector<8x128xf32>
    %c0_104 = arith.constant 0 : index
    %c0_105 = arith.constant 0 : index
    %346 = vector.load %arg4[%c0_104, %c0_105] : memref<128x512xf32, #tpu.memory_space<vmem>>, vector<128x512xf32>
    %cst_106 = arith.constant dense<0.000000e+00> : vector<8x512xf32>
    %347 = tpu.matmul %345, %346, %cst_106 {dimension_numbers = #tpu.dot_dimension_numbers<[1], [0], [0], [1], [0, 0, 1, 1], [], []>} : vector<8x128xf32>, vector<128x512xf32>, vector<8x512xf32> -> vector<8x512xf32>
    %348 = vector.extract_strided_slice %347 {offsets = [0, 0], sizes = [8, 256], strides = [1, 1]} : vector<8x512xf32> to vector<8x256xf32>
    %c0_107 = arith.constant 0 : index
    %c0_108 = arith.constant 0 : index
    %349 = vector.load %arg5[%c0_107, %c0_108] : memref<1x256xf32, #tpu.memory_space<vmem>>, vector<1x256xf32>
    %350 = vector.broadcast %349 : vector<1x256xf32> to vector<8x256xf32>
    %351 = arith.addf %348, %350 : vector<8x256xf32>
    %352 = vector.extract_strided_slice %347 {offsets = [0, 256], sizes = [8, 256], strides = [1, 1]} : vector<8x512xf32> to vector<8x256xf32>
    %353 = vector.extract_strided_slice %351 {offsets = [0, 0], sizes = [8, 192], strides = [1, 1]} : vector<8x256xf32> to vector<8x192xf32>
    %cst_109 = arith.constant 5.000000e-01 : f32
    %354 = vector.broadcast %cst_109 : f32 to vector<8x192xf32>
    %355 = arith.mulf %354, %353 : vector<8x192xf32>
    %356 = math.tanh %355 : vector<8x192xf32>
    %cst_110 = arith.constant 5.000000e-01 : f32
    %357 = vector.broadcast %cst_110 : f32 to vector<8x192xf32>
    %358 = arith.mulf %357, %356 : vector<8x192xf32>
    %cst_111 = arith.constant 5.000000e-01 : f32
    %359 = vector.broadcast %cst_111 : f32 to vector<8x192xf32>
    %360 = arith.addf %358, %359 : vector<8x192xf32>
    %361 = vector.extract_strided_slice %360 {offsets = [0, 0], sizes = [8, 64], strides = [1, 1]} : vector<8x192xf32> to vector<8x64xf32>
    %362 = vector.extract_strided_slice %360 {offsets = [0, 64], sizes = [8, 64], strides = [1, 1]} : vector<8x192xf32> to vector<8x64xf32>
    %363 = vector.extract_strided_slice %360 {offsets = [0, 128], sizes = [8, 64], strides = [1, 1]} : vector<8x192xf32> to vector<8x64xf32>
    %364 = vector.extract_strided_slice %351 {offsets = [0, 192], sizes = [8, 64], strides = [1, 1]} : vector<8x256xf32> to vector<8x64xf32>
    %365 = math.tanh %364 : vector<8x64xf32>
    %366 = arith.mulf %362, %315 : vector<8x64xf32>
    %367 = arith.mulf %361, %365 : vector<8x64xf32>
    %368 = arith.addf %366, %367 : vector<8x64xf32>
    %369 = math.tanh %368 : vector<8x64xf32>
    %370 = arith.mulf %363, %369 : vector<8x64xf32>
    %c0_112 = arith.constant 0 : index
    %c7 = arith.constant 7 : index
    %371 = vector.load %arg1[%c0_112, %c7] : memref<8x8xf32, #tpu.memory_space<vmem>>, vector<8x1xf32>
    %c0_113 = arith.constant 0 : index
    %c0_114 = arith.constant 0 : index
    %372 = vector.load %arg2[%c0_113, %c0_114] : memref<1x256xf32, #tpu.memory_space<vmem>>, vector<1x256xf32>
    %373 = vector.broadcast %371 : vector<8x1xf32> to vector<8x256xf32>
    %374 = vector.broadcast %372 : vector<1x256xf32> to vector<8x256xf32>
    %375 = arith.mulf %373, %374 : vector<8x256xf32>
    %c0_115 = arith.constant 0 : index
    %c0_116 = arith.constant 0 : index
    %376 = vector.load %arg3[%c0_115, %c0_116] : memref<1x256xf32, #tpu.memory_space<vmem>>, vector<1x256xf32>
    %377 = vector.broadcast %376 : vector<1x256xf32> to vector<8x256xf32>
    %378 = arith.addf %375, %377 : vector<8x256xf32>
    %379 = arith.addf %378, %352 : vector<8x256xf32>
    %380 = vector.extract_strided_slice %379 {offsets = [0, 0], sizes = [8, 192], strides = [1, 1]} : vector<8x256xf32> to vector<8x192xf32>
    %cst_117 = arith.constant 5.000000e-01 : f32
    %381 = vector.broadcast %cst_117 : f32 to vector<8x192xf32>
    %382 = arith.mulf %381, %380 : vector<8x192xf32>
    %383 = math.tanh %382 : vector<8x192xf32>
    %cst_118 = arith.constant 5.000000e-01 : f32
    %384 = vector.broadcast %cst_118 : f32 to vector<8x192xf32>
    %385 = arith.mulf %384, %383 : vector<8x192xf32>
    %cst_119 = arith.constant 5.000000e-01 : f32
    %386 = vector.broadcast %cst_119 : f32 to vector<8x192xf32>
    %387 = arith.addf %385, %386 : vector<8x192xf32>
    %388 = vector.extract_strided_slice %387 {offsets = [0, 0], sizes = [8, 64], strides = [1, 1]} : vector<8x192xf32> to vector<8x64xf32>
    %389 = vector.extract_strided_slice %387 {offsets = [0, 64], sizes = [8, 64], strides = [1, 1]} : vector<8x192xf32> to vector<8x64xf32>
    %390 = vector.extract_strided_slice %387 {offsets = [0, 128], sizes = [8, 64], strides = [1, 1]} : vector<8x192xf32> to vector<8x64xf32>
    %391 = vector.extract_strided_slice %379 {offsets = [0, 192], sizes = [8, 64], strides = [1, 1]} : vector<8x256xf32> to vector<8x64xf32>
    %392 = math.tanh %391 : vector<8x64xf32>
    %393 = arith.mulf %389, %342 : vector<8x64xf32>
    %394 = arith.mulf %388, %392 : vector<8x64xf32>
    %395 = arith.addf %393, %394 : vector<8x64xf32>
    %396 = math.tanh %395 : vector<8x64xf32>
    %397 = arith.mulf %390, %396 : vector<8x64xf32>
    %398 = tpu.concatenate %397, %370 in 1 : vector<8x64xf32>, vector<8x64xf32> -> vector<8x128xf32>
    %c0_120 = arith.constant 0 : index
    %c0_121 = arith.constant 0 : index
    %399 = vector.load %arg4[%c0_120, %c0_121] : memref<128x512xf32, #tpu.memory_space<vmem>>, vector<128x512xf32>
    %cst_122 = arith.constant dense<0.000000e+00> : vector<8x512xf32>
    %400 = tpu.matmul %398, %399, %cst_122 {dimension_numbers = #tpu.dot_dimension_numbers<[1], [0], [0], [1], [0, 0, 1, 1], [], []>} : vector<8x128xf32>, vector<128x512xf32>, vector<8x512xf32> -> vector<8x512xf32>
    %401 = vector.extract_strided_slice %400 {offsets = [0, 0], sizes = [8, 256], strides = [1, 1]} : vector<8x512xf32> to vector<8x256xf32>
    %c0_123 = arith.constant 0 : index
    %c0_124 = arith.constant 0 : index
    %402 = vector.load %arg5[%c0_123, %c0_124] : memref<1x256xf32, #tpu.memory_space<vmem>>, vector<1x256xf32>
    %403 = vector.broadcast %402 : vector<1x256xf32> to vector<8x256xf32>
    %404 = arith.addf %401, %403 : vector<8x256xf32>
    %405 = vector.extract_strided_slice %404 {offsets = [0, 0], sizes = [8, 192], strides = [1, 1]} : vector<8x256xf32> to vector<8x192xf32>
    %cst_125 = arith.constant 5.000000e-01 : f32
    %406 = vector.broadcast %cst_125 : f32 to vector<8x192xf32>
    %407 = arith.mulf %406, %405 : vector<8x192xf32>
    %408 = math.tanh %407 : vector<8x192xf32>
    %cst_126 = arith.constant 5.000000e-01 : f32
    %409 = vector.broadcast %cst_126 : f32 to vector<8x192xf32>
    %410 = arith.mulf %409, %408 : vector<8x192xf32>
    %cst_127 = arith.constant 5.000000e-01 : f32
    %411 = vector.broadcast %cst_127 : f32 to vector<8x192xf32>
    %412 = arith.addf %410, %411 : vector<8x192xf32>
    %413 = vector.extract_strided_slice %412 {offsets = [0, 0], sizes = [8, 64], strides = [1, 1]} : vector<8x192xf32> to vector<8x64xf32>
    %414 = vector.extract_strided_slice %412 {offsets = [0, 64], sizes = [8, 64], strides = [1, 1]} : vector<8x192xf32> to vector<8x64xf32>
    %415 = vector.extract_strided_slice %412 {offsets = [0, 128], sizes = [8, 64], strides = [1, 1]} : vector<8x192xf32> to vector<8x64xf32>
    %416 = vector.extract_strided_slice %404 {offsets = [0, 192], sizes = [8, 64], strides = [1, 1]} : vector<8x256xf32> to vector<8x64xf32>
    %417 = math.tanh %416 : vector<8x64xf32>
    %418 = arith.mulf %414, %368 : vector<8x64xf32>
    %419 = arith.mulf %413, %417 : vector<8x64xf32>
    %420 = arith.addf %418, %419 : vector<8x64xf32>
    %421 = math.tanh %420 : vector<8x64xf32>
    %422 = arith.mulf %415, %421 : vector<8x64xf32>
    %c0_128 = arith.constant 0 : index
    %c0_129 = arith.constant 0 : index
    %423 = vector.load %arg6[%c0_128, %c0_129] : memref<1x64xf32, #tpu.memory_space<vmem>>, vector<1x64xf32>
    %424 = vector.broadcast %423 : vector<1x64xf32> to vector<8x64xf32>
    %425 = arith.mulf %422, %424 : vector<8x64xf32>
    %cst_130 = arith.constant dense<0.000000e+00> : vector<8xf32>
    %426 = vector.multi_reduction <add>, %425, %cst_130 [1] : vector<8x64xf32> to vector<8xf32>
    %427 = vector.shape_cast %426 : vector<8xf32> to vector<8x1xf32>
    %c0_131 = arith.constant 0 : index
    %c0_132 = arith.constant 0 : index
    %428 = vector.load %arg7[%c0_131, %c0_132] : memref<1x1xf32, #tpu.memory_space<vmem>>, vector<1x1xf32>
    %429 = vector.broadcast %428 : vector<1x1xf32> to vector<8x1xf32>
    %430 = arith.addf %427, %429 : vector<8x1xf32>
    %c0_133 = arith.constant 0 : index
    %c7_134 = arith.constant 7 : index
    %431 = vector.load %arg1[%c0_133, %c7_134] : memref<8x8xf32, #tpu.memory_space<vmem>>, vector<8x1xf32>
    %432 = arith.addf %431, %430 : vector<8x1xf32>
    %c0_135 = arith.constant 0 : index
    %c0_136 = arith.constant 0 : index
    %433 = vector.load %arg8[%c0_135, %c0_136] : memref<8x1xf32, #tpu.memory_space<vmem>>, vector<8x1xf32>
    tpu.vector_store %arg8[%c0_135, %c0_136], %432 {strides = array<i32>} : memref<8x1xf32, #tpu.memory_space<vmem>>, vector<8x1xf32>,
    return
  }
  func.func @transform_0(%arg0: i32) -> (i32, i32) {
    %c0_i32 = arith.constant 0 : i32
    %c0_i32_0 = arith.constant 0 : i32
    return %arg0, %c0_i32 : i32, i32
  }
  func.func @transform_1(%arg0: i32) -> (i32, i32) {
    %c0_i32 = arith.constant 0 : i32
    %c0_i32_0 = arith.constant 0 : i32
    %c0_i32_1 = arith.constant 0 : i32
    return %c0_i32, %c0_i32_0 : i32, i32
  }
  func.func @transform_2(%arg0: i32) -> (i32, i32) {
    %c0_i32 = arith.constant 0 : i32
    %c0_i32_0 = arith.constant 0 : i32
    %c0_i32_1 = arith.constant 0 : i32
    return %c0_i32, %c0_i32_0 : i32, i32
  }
  func.func @transform_3(%arg0: i32) -> (i32, i32) {
    %c0_i32 = arith.constant 0 : i32
    %c0_i32_0 = arith.constant 0 : i32
    %c0_i32_1 = arith.constant 0 : i32
    return %c0_i32, %c0_i32_0 : i32, i32
  }
  func.func @transform_4(%arg0: i32) -> (i32, i32) {
    %c0_i32 = arith.constant 0 : i32
    %c0_i32_0 = arith.constant 0 : i32
    %c0_i32_1 = arith.constant 0 : i32
    return %c0_i32, %c0_i32_0 : i32, i32
  }
  func.func @transform_5(%arg0: i32) -> (i32, i32) {
    %c0_i32 = arith.constant 0 : i32
    %c0_i32_0 = arith.constant 0 : i32
    %c0_i32_1 = arith.constant 0 : i32
    return %c0_i32, %c0_i32_0 : i32, i32
  }
  func.func @transform_6(%arg0: i32) -> (i32, i32) {
    %c0_i32 = arith.constant 0 : i32
    %c0_i32_0 = arith.constant 0 : i32
    %c0_i32_1 = arith.constant 0 : i32
    return %c0_i32, %c0_i32_0 : i32, i32
  }
  func.func @transform_7(%arg0: i32) -> (i32, i32) {
    %c0_i32 = arith.constant 0 : i32
    %c0_i32_0 = arith.constant 0 : i32
    return %arg0, %c0_i32 : i32, i32
  }
}

</mosaic_0001>

<llo_original>
// kernel: lstm_predictor.1
$region0: #{lstm_predictor.1}
  #allocation0 [shape = 'u32[]', space=smem, size = 0x4, offset = 0x4, fixed_abs, tag = 'smem constant byte address 0x4 - core index']
  #allocation1 [shape = 'u32[72,128]{1,0:T(1,128)}', space=vmem, size = 0x9000, scoped, tag = 'internal scratch']
  #allocation2 [shape = 'f32[1,1]{1,0:T(1,128)S(1)}', space=vmem, size = 0x200, scoped, tag = 'scoped memory for lstm_predictor.1']
  %s0 = inlined_call_operand.vmem [shape: f32[8,8], index: 0, kind: input, shape index: {}]
  %s1 = inlined_call_operand.vmem [shape: f32[1,256], index: 1, kind: input, shape index: {}]
  %s2 = inlined_call_operand.vmem [shape: f32[1,256], index: 2, kind: input, shape index: {}]
  %s3 = inlined_call_operand.hbm [shape: f32[128,512], index: 3, kind: input, shape index: {}]
  %s4 = inlined_call_operand.vmem [shape: f32[1,256], index: 4, kind: input, shape index: {}]
  %s5 = inlined_call_operand.vmem [shape: f32[1,64], index: 5, kind: input, shape index: {}]
  %s6 = inlined_call_operand.<no memory space> [shape: f32[1,1], index: 6, kind: input, shape index: {}]
  %s7 = inlined_call_operand.vmem [shape: f32[8,1], index: 7, kind: output, shape index: {}]
  %s8 = sld [smem:[#allocation0]]
  $region42: #{lstm_predictor.1} parent=0
    _
  %s10 = ssub.s32 1, %s8
  %s11 = scalar_select 0, %s10, %s8
  %v12 = vstv %s6
  %13 = vst [vmem:[#allocation2] sm:$0x1] %v12
  $region1: #{lstm_predictor.1} parent=0
    #allocation3 [shape = 'u8[262144]{0}', space=vmem, size = 0x40000, scoped, tag = 'input window, operand 3, single buffered']
    #allocation4 [shape = 's32[1]{0}', space=sflag, size = 0x4, scoped, tag = 'scoped memory for lstm_predictor.1']
    %14 = vsyncpa [#allocation4], 0
    // Predicated region
    $region2: #{lstm_predictor.1} parent=1 // pred_check
      _
    $region3: #{lstm_predictor.1} parent=1 // pred_check_branch
      %16 = sbr.rel (0) target = $region5
    $region4: #{lstm_predictor.1} parent=1 // pred_region
      _
    $region5: #{lstm_predictor.1} parent=1 // pred_fallthru
      _
    // Predicated region
    $region6: #{lstm_predictor.1} parent=1 // pred_check
      _
    $region7: #{lstm_predictor.1} parent=1 // pred_check_branch
      %18 = sbr.rel (0) target = $region9
    $region8: #{lstm_predictor.1} parent=1 // pred_region
      _
    $region9: #{lstm_predictor.1} parent=1 // pred_fallthru
      _
    // Predicated region
    $region10: #{lstm_predictor.1} parent=1 // pred_check
      _
    $region11: #{lstm_predictor.1} parent=1 // pred_check_branch
      %20 = sbr.rel (0) target = $region13
    $region12: #{lstm_predictor.1} parent=1 // pred_region
      _
    $region13: #{lstm_predictor.1} parent=1 // pred_fallthru
      _
    // Predicated region
    $region14: #{lstm_predictor.1} parent=1 // pred_check
      _
    $region15: #{lstm_predictor.1} parent=1 // pred_check_branch
      %22 = sbr.rel (0) target = $region17
    $region16: #{lstm_predictor.1} parent=1 // pred_region
      %24 = vsyncadd [#allocation4], 0
      %s25 = sshll.u32 %s3, 4
      %s26 = int_to_ptr.hbm [resolvable:$true] %s25
      %s27 = sshll.u32 [#allocation3], 4
      %s28 = int_to_ptr.vmem [resolvable:$true] %s27
      %33 = dma.hbm_to_vmem [thread:$0]  %s26, 8192, %s28, [#allocation4], 512, 512, 32
    $region17: #{lstm_predictor.1} parent=1 // pred_fallthru
      _
    // Predicated region
    $region18: #{lstm_predictor.1} parent=1 // pred_check
      _
    $region19: #{lstm_predictor.1} parent=1 // pred_check_branch
      %35 = sbr.rel (0) target = $region21
    $region20: #{lstm_predictor.1} parent=1 // pred_region
      _
    $region21: #{lstm_predictor.1} parent=1 // pred_fallthru
      _
    // Predicated region
    $region22: #{lstm_predictor.1} parent=1 // pred_check
      _
    $region23: #{lstm_predictor.1} parent=1 // pred_check_branch
      %37 = sbr.rel (0) target = $region25
    $region24: #{lstm_predictor.1} parent=1 // pred_region
      _
    $region25: #{lstm_predictor.1} parent=1 // pred_fallthru
      _
    // Predicated region
    $region26: #{lstm_predictor.1} parent=1 // pred_check
      _
    $region27: #{lstm_predictor.1} parent=1 // pred_check_branch
      %39 = sbr.rel (0) target = $region29
    $region28: #{lstm_predictor.1} parent=1 // pred_region
      _
    $region29: #{lstm_predictor.1} parent=1 // pred_fallthru
      _
    // Predicated region
    $region30: #{lstm_predictor.1} parent=1 // pred_check
      _
    $region31: #{lstm_predictor.1} parent=1 // pred_check_branch
      %41 = sbr.rel (0) target = $region33
    $region32: #{lstm_predictor.1} parent=1 // pred_region
      %43 = dma.done [#allocation4], 8192
    $region33: #{lstm_predictor.1} parent=1 // pred_fallthru
      _
    %v44 = vld [vmem:[%s0] sm:$0xff]
    %v45 = vld [vmem:[%s1] sm:$0x3]
    %47 = vset.pattern.permute.xlu0 0
    %48 = vperm.xlu0 %47, %v44
    %v49 = vpop.permute.xlu0 %48
    %v52 = vperm.slane %v45, 0
    %v53 = vperm.slane %v45, 1
    %v56 = vmul.f32 %v49, %v52
    %v57 = vmul.f32 %v49, %v53
    %v58 = vld [vmem:[%s2] sm:$0x3]
    %v60 = vperm.slane %v58, 0
    %v61 = vperm.slane %v58, 1
    %v64 = vadd.f32 %v56, %v60
    %v65 = vadd.f32 %v57, %v61
    %v66 = vmul.f32 %v64, 0.5
    %v67 = vmul.f32 %v65, 0.5
    %v68 = vtanh.pop %v66
    %v69 = vtanh.pop %v67
    %v70 = vmul.f32 %v68, 0.5
    %v71 = vmul.f32 %v69, 0.5
    %v72 = vadd.f32 %v70, 0.5
    %v73 = vadd.f32 %v71, 0.5
    %v74 = vtanh.pop %v65
    %v75 = vmul.f32 %v72, 0.0
    %77 = vrot.lane.b32.xlu0 %v74, 64
    %v78 = vpop.permute.xlu0 %77
    %v80 = vmul.f32 %v72, %v78
    %82 = vrot.lane.b32.xlu0 %v80, 64
    %v83 = vpop.permute.xlu0 %82
    %v85 = vadd.f32 %v75, %v83
    %v86 = vtanh.pop %v85
    %88 = vrot.lane.b32.xlu0 %v86, 64
    %v89 = vpop.permute.xlu0 %88
    %v91 = vmul.f32 %v73, %v89
    %vm92 = vcmask 523264
    %v93 = vsel %vm92, %v91, 0.0
    %v94 = vld [vmem:[#allocation3] sm:$0xff]
    %v95 = vld [vmem:[#allocation3 + $0x8] sm:$0xff]
    %v96 = vld [vmem:[#allocation3 + $0x10] sm:$0xff]
    %v97 = vld [vmem:[#allocation3 + $0x18] sm:$0xff]
    %v98 = vld [vmem:[#allocation3 + $0x20] sm:$0xff]
    %v99 = vld [vmem:[#allocation3 + $0x28] sm:$0xff]
    %v100 = vld [vmem:[#allocation3 + $0x30] sm:$0xff]
    %v101 = vld [vmem:[#allocation3 + $0x38] sm:$0xff]
    %v102 = vld [vmem:[#allocation3 + $0x40] sm:$0xff]
    %v103 = vld [vmem:[#allocation3 + $0x48] sm:$0xff]
    %v104 = vld [vmem:[#allocation3 + $0x50] sm:$0xff]
    %v105 = vld [vmem:[#allocation3 + $0x58] sm:$0xff]
    %v106 = vld [vmem:[#allocation3 + $0x60] sm:$0xff]
    %v107 = vld [vmem:[#allocation3 + $0x68] sm:$0xff]
    %v108 = vld [vmem:[#allocation3 + $0x70] sm:$0xff]
    %v109 = vld [vmem:[#allocation3 + $0x78] sm:$0xff]
    %v110 = vld [vmem:[#allocation3 + $0x80] sm:$0xff]
    %v111 = vld [vmem:[#allocation3 + $0x88] sm:$0xff]
    %v112 = vld [vmem:[#allocation3 + $0x90] sm:$0xff]
    %v113 = vld [vmem:[#allocation3 + $0x98] sm:$0xff]
    %v114 = vld [vmem:[#allocation3 + $0xa0] sm:$0xff]
    %v115 = vld [vmem:[#allocation3 + $0xa8] sm:$0xff]
    %v116 = vld [vmem:[#allocation3 + $0xb0] sm:$0xff]
    %v117 = vld [vmem:[#allocation3 + $0xb8] sm:$0xff]
    %v118 = vld [vmem:[#allocation3 + $0xc0] sm:$0xff]
    %v119 = vld [vmem:[#allocation3 + $0xc8] sm:$0xff]
    %v120 = vld [vmem:[#allocation3 + $0xd0] sm:$0xff]
    %v121 = vld [vmem:[#allocation3 + $0xd8] sm:$0xff]
    %v122 = vld [vmem:[#allocation3 + $0xe0] sm:$0xff]
    %v123 = vld [vmem:[#allocation3 + $0xe8] sm:$0xff]
    %v124 = vld [vmem:[#allocation3 + $0xf0] sm:$0xff]
    %v125 = vld [vmem:[#allocation3 + $0xf8] sm:$0xff]
    %v126 = vld [vmem:[#allocation3 + $0x100] sm:$0xff]
    %v127 = vld [vmem:[#allocation3 + $0x108] sm:$0xff]
    %v128 = vld [vmem:[#allocation3 + $0x110] sm:$0xff]
    %v129 = vld [vmem:[#allocation3 + $0x118] sm:$0xff]
    %v130 = vld [vmem:[#allocation3 + $0x120] sm:$0xff]
    %v131 = vld [vmem:[#allocation3 + $0x128] sm:$0xff]
    %v132 = vld [vmem:[#allocation3 + $0x130] sm:$0xff]
    %v133 = vld [vmem:[#allocation3 + $0x138] sm:$0xff]
    %v134 = vld [vmem:[#allocation3 + $0x140] sm:$0xff]
    %v135 = vld [vmem:[#allocation3 + $0x148] sm:$0xff]
    %v136 = vld [vmem:[#allocation3 + $0x150] sm:$0xff]
    %v137 = vld [vmem:[#allocation3 + $0x158] sm:$0xff]
    %v138 = vld [vmem:[#allocation3 + $0x160] sm:$0xff]
    %v139 = vld [vmem:[#allocation3 + $0x168] sm:$0xff]
    %v140 = vld [vmem:[#allocation3 + $0x170] sm:$0xff]
    %v141 = vld [vmem:[#allocation3 + $0x178] sm:$0xff]
    %v142 = vld [vmem:[#allocation3 + $0x180] sm:$0xff]
    %v143 = vld [vmem:[#allocation3 + $0x188] sm:$0xff]
    %v144 = vld [vmem:[#allocation3 + $0x190] sm:$0xff]
    %v145 = vld [vmem:[#allocation3 + $0x198] sm:$0xff]
    %v146 = vld [vmem:[#allocation3 + $0x1a0] sm:$0xff]
    %v147 = vld [vmem:[#allocation3 + $0x1a8] sm:$0xff]
    %v148 = vld [vmem:[#allocation3 + $0x1b0] sm:$0xff]
    %v149 = vld [vmem:[#allocation3 + $0x1b8] sm:$0xff]
    %v150 = vld [vmem:[#allocation3 + $0x1c0] sm:$0xff]
    %v151 = vld [vmem:[#allocation3 + $0x1c8] sm:$0xff]
    %v152 = vld [vmem:[#allocation3 + $0x1d0] sm:$0xff]
    %v153 = vld [vmem:[#allocation3 + $0x1d8] sm:$0xff]
    %v154 = vld [vmem:[#allocation3 + $0x1e0] sm:$0xff]
    %v155 = vld [vmem:[#allocation3 + $0x1e8] sm:$0xff]
    %v156 = vld [vmem:[#allocation3 + $0x1f0] sm:$0xff]
    %v157 = vld [vmem:[#allocation3 + $0x1f8] sm:$0xff]
    %158 = vmatpush.msra.mxu0 %v154
    %159 = vmatpush.msra.mxu0 %v150
    %160 = vmatpush.msra.mxu0 %v146
    %161 = vmatpush.msra.mxu0 %v142
    %162 = vmatpush.msra.mxu0 %v138
    %163 = vmatpush.msra.mxu0 %v134
    %164 = vmatpush.msra.mxu0 %v130
    %165 = vmatpush.msra.mxu0 %v126
    %166 = vmatpush.msra.mxu0 %v122
    %167 = vmatpush.msra.mxu0 %v118
    %168 = vmatpush.msra.mxu0 %v114
    %169 = vmatpush.msra.mxu0 %v110
    %170 = vmatpush.msra.mxu0 %v106
    %171 = vmatpush.msra.mxu0 %v102
    %172 = vmatpush.msra.mxu0 %v98
    %173 = vmatpush.msra.mxu0 %v94
    %174 = vmatmul.f32.gmra.mxu0 %v93
    %v175 = vpop.f32.mrf.mxu0
    %v176 = vadd.f32 0.0, %v175
    %177 = vdwg.mxu0
    %178 = vmatpush.msra.mxu0 %v155
    %179 = vmatpush.msra.mxu0 %v151
    %180 = vmatpush.msra.mxu0 %v147
    %181 = vmatpush.msra.mxu0 %v143
    %182 = vmatpush.msra.mxu0 %v139
    %183 = vmatpush.msra.mxu0 %v135
    %184 = vmatpush.msra.mxu0 %v131
    %185 = vmatpush.msra.mxu0 %v127
    %186 = vmatpush.msra.mxu0 %v123
    %187 = vmatpush.msra.mxu0 %v119
    %188 = vmatpush.msra.mxu0 %v115
    %189 = vmatpush.msra.mxu0 %v111
    %190 = vmatpush.msra.mxu0 %v107
    %191 = vmatpush.msra.mxu0 %v103
    %192 = vmatpush.msra.mxu0 %v99
    %193 = vmatpush.msra.mxu0 %v95
    %194 = vmatmul.f32.gmra.mxu0 %v93
    %v195 = vpop.f32.mrf.mxu0
    %v196 = vadd.f32 0.0, %v195
    %197 = vdwg.mxu0
    %198 = vmatpush.msra.mxu0 %v156
    %199 = vmatpush.msra.mxu0 %v152
    %200 = vmatpush.msra.mxu0 %v148
    %201 = vmatpush.msra.mxu0 %v144
    %202 = vmatpush.msra.mxu0 %v140
    %203 = vmatpush.msra.mxu0 %v136
    %204 = vmatpush.msra.mxu0 %v132
    %205 = vmatpush.msra.mxu0 %v128
    %206 = vmatpush.msra.mxu0 %v124
    %207 = vmatpush.msra.mxu0 %v120
    %208 = vmatpush.msra.mxu0 %v116
    %209 = vmatpush.msra.mxu0 %v112
    %210 = vmatpush.msra.mxu0 %v108
    %211 = vmatpush.msra.mxu0 %v104
    %212 = vmatpush.msra.mxu0 %v100
    %213 = vmatpush.msra.mxu0 %v96
    %214 = vmatmul.f32.gmra.mxu0 %v93
    %v215 = vpop.f32.mrf.mxu0
    %v216 = vadd.f32 0.0, %v215
    %217 = vdwg.mxu0
    %218 = vmatpush.msra.mxu0 %v157
    %219 = vmatpush.msra.mxu0 %v153
    %220 = vmatpush.msra.mxu0 %v149
    %221 = vmatpush.msra.mxu0 %v145
    %222 = vmatpush.msra.mxu0 %v141
    %223 = vmatpush.msra.mxu0 %v137
    %224 = vmatpush.msra.mxu0 %v133
    %225 = vmatpush.msra.mxu0 %v129
    %226 = vmatpush.msra.mxu0 %v125
    %227 = vmatpush.msra.mxu0 %v121
    %228 = vmatpush.msra.mxu0 %v117
    %229 = vmatpush.msra.mxu0 %v113
    %230 = vmatpush.msra.mxu0 %v109
    %231 = vmatpush.msra.mxu0 %v105
    %232 = vmatpush.msra.mxu0 %v101
    %233 = vmatpush.msra.mxu0 %v97
    %234 = vmatmul.f32.gmra.mxu0 %v93
    %v235 = vpop.f32.mrf.mxu0
    %v236 = vadd.f32 0.0, %v235
    %237 = vdwg.mxu0
    %v238 = vld [vmem:[%s4] sm:$0x3]
    %v240 = vperm.slane %v238, 0
    %v241 = vperm.slane %v238, 1
    %v244 = vadd.f32 %v176, %v240
    %v245 = vadd.f32 %v196, %v241
    %v246 = vmul.f32 %v244, 0.5
    %v247 = vmul.f32 %v245, 0.5
    %v248 = vtanh.pop %v246
    %v249 = vtanh.pop %v247
    %v250 = vmul.f32 %v248, 0.5
    %v251 = vmul.f32 %v249, 0.5
    %v252 = vadd.f32 %v250, 0.5
    %v253 = vadd.f32 %v251, 0.5
    %v254 = vtanh.pop %v245
    %v255 = vmul.f32 %v252, 0.0
    %257 = vrot.lane.b32.xlu0 %v254, 64
    %v258 = vpop.permute.xlu0 %257
    %v260 = vmul.f32 %v252, %v258
    %262 = vrot.lane.b32.xlu0 %v260, 64
    %v263 = vpop.permute.xlu0 %262
    %v265 = vadd.f32 %v255, %v263
    %v266 = vtanh.pop %v265
    %268 = vrot.lane.b32.xlu0 %v266, 64
    %v269 = vpop.permute.xlu0 %268
    %v271 = vmul.f32 %v253, %v269
    %272 = vset.pattern.permute.xlu0 1
    %273 = vperm.xlu0 %272, %v44
    %v274 = vpop.permute.xlu0 %273
    %v276 = vmul.f32 %v274, %v52
    %v277 = vmul.f32 %v274, %v53
    %v278 = vadd.f32 %v276, %v60
    %v279 = vadd.f32 %v277, %v61
    %v280 = vadd.f32 %v278, %v216
    %v281 = vadd.f32 %v279, %v236
    %v282 = vmul.f32 %v280, 0.5
    %v283 = vmul.f32 %v281, 0.5
    %v284 = vtanh.pop %v282
    %v285 = vtanh.pop %v283
    %v286 = vmul.f32 %v284, 0.5
    %v287 = vmul.f32 %v285, 0.5
    %v288 = vadd.f32 %v286, 0.5
    %v289 = vadd.f32 %v287, 0.5
    %v290 = vtanh.pop %v281
    %v291 = vmul.f32 %v288, %v85
    %293 = vrot.lane.b32.xlu0 %v290, 64
    %v294 = vpop.permute.xlu0 %293
    %v296 = vmul.f32 %v288, %v294
    %298 = vrot.lane.b32.xlu0 %v296, 64
    %v299 = vpop.permute.xlu0 %298
    %v301 = vadd.f32 %v291, %v299
    %v302 = vtanh.pop %v301
    %304 = vrot.lane.b32.xlu0 %v302, 64
    %v305 = vpop.permute.xlu0 %304
    %v307 = vmul.f32 %v289, %v305
    %309 = vrot.lane.b32.xlu0 %v271, 64
    %v310 = vpop.permute.xlu0 %309
    %v312 = vsel %vm92, %v307, %v310
    %313 = vmatpush.msra.mxu0 %v154
    %314 = vmatpush.msra.mxu0 %v150
    %315 = vmatpush.msra.mxu0 %v146
    %316 = vmatpush.msra.mxu0 %v142
    %317 = vmatpush.msra.mxu0 %v138
    %318 = vmatpush.msra.mxu0 %v134
    %319 = vmatpush.msra.mxu0 %v130
    %320 = vmatpush.msra.mxu0 %v126
    %321 = vmatpush.msra.mxu0 %v122
    %322 = vmatpush.msra.mxu0 %v118
    %323 = vmatpush.msra.mxu0 %v114
    %324 = vmatpush.msra.mxu0 %v110
    %325 = vmatpush.msra.mxu0 %v106
    %326 = vmatpush.msra.mxu0 %v102
    %327 = vmatpush.msra.mxu0 %v98
    %328 = vmatpush.msra.mxu0 %v94
    %329 = vmatmul.f32.gmra.mxu0 %v312
    %v330 = vpop.f32.mrf.mxu0
    %v331 = vadd.f32 0.0, %v330
    %332 = vdwg.mxu0
    %333 = vmatpush.msra.mxu0 %v155
    %334 = vmatpush.msra.mxu0 %v151
    %335 = vmatpush.msra.mxu0 %v147
    %336 = vmatpush.msra.mxu0 %v143
    %337 = vmatpush.msra.mxu0 %v139
    %338 = vmatpush.msra.mxu0 %v135
    %339 = vmatpush.msra.mxu0 %v131
    %340 = vmatpush.msra.mxu0 %v127
    %341 = vmatpush.msra.mxu0 %v123
    %342 = vmatpush.msra.mxu0 %v119
    %343 = vmatpush.msra.mxu0 %v115
    %344 = vmatpush.msra.mxu0 %v111
    %345 = vmatpush.msra.mxu0 %v107
    %346 = vmatpush.msra.mxu0 %v103
    %347 = vmatpush.msra.mxu0 %v99
    %348 = vmatpush.msra.mxu0 %v95
    %349 = vmatmul.f32.gmra.mxu0 %v312
    %v350 = vpop.f32.mrf.mxu0
    %v351 = vadd.f32 0.0, %v350
    %352 = vdwg.mxu0
    %353 = vmatpush.msra.mxu0 %v156
    %354 = vmatpush.msra.mxu0 %v152
    %355 = vmatpush.msra.mxu0 %v148
    %356 = vmatpush.msra.mxu0 %v144
    %357 = vmatpush.msra.mxu0 %v140
    %358 = vmatpush.msra.mxu0 %v136
    %359 = vmatpush.msra.mxu0 %v132
    %360 = vmatpush.msra.mxu0 %v128
    %361 = vmatpush.msra.mxu0 %v124
    %362 = vmatpush.msra.mxu0 %v120
    %363 = vmatpush.msra.mxu0 %v116
    %364 = vmatpush.msra.mxu0 %v112
    %365 = vmatpush.msra.mxu0 %v108
    %366 = vmatpush.msra.mxu0 %v104
    %367 = vmatpush.msra.mxu0 %v100
    %368 = vmatpush.msra.mxu0 %v96
    %369 = vmatmul.f32.gmra.mxu0 %v312
    %v370 = vpop.f32.mrf.mxu0
    %v371 = vadd.f32 0.0, %v370
    %372 = vdwg.mxu0
    %373 = vmatpush.msra.mxu0 %v157
    %374 = vmatpush.msra.mxu0 %v153
    %375 = vmatpush.msra.mxu0 %v149
    %376 = vmatpush.msra.mxu0 %v145
    %377 = vmatpush.msra.mxu0 %v141
    %378 = vmatpush.msra.mxu0 %v137
    %379 = vmatpush.msra.mxu0 %v133
    %380 = vmatpush.msra.mxu0 %v129
    %381 = vmatpush.msra.mxu0 %v125
    %382 = vmatpush.msra.mxu0 %v121
    %383 = vmatpush.msra.mxu0 %v117
    %384 = vmatpush.msra.mxu0 %v113
    %385 = vmatpush.msra.mxu0 %v109
    %386 = vmatpush.msra.mxu0 %v105
    %387 = vmatpush.msra.mxu0 %v101
    %388 = vmatpush.msra.mxu0 %v97
    %389 = vmatmul.f32.gmra.mxu0 %v312
    %v390 = vpop.f32.mrf.mxu0
    %v391 = vadd.f32 0.0, %v390
    %392 = vdwg.mxu0
    %v393 = vadd.f32 %v331, %v240
    %v394 = vadd.f32 %v351, %v241
    %v395 = vmul.f32 %v393, 0.5
    %v396 = vmul.f32 %v394, 0.5
    %v397 = vtanh.pop %v395
    %v398 = vtanh.pop %v396
    %v399 = vmul.f32 %v397, 0.5
    %v400 = vmul.f32 %v398, 0.5
    %v401 = vadd.f32 %v399, 0.5
    %v402 = vadd.f32 %v400, 0.5
    %v403 = vtanh.pop %v394
    %v404 = vmul.f32 %v401, %v265
    %406 = vrot.lane.b32.xlu0 %v403, 64
    %v407 = vpop.permute.xlu0 %406
    %v409 = vmul.f32 %v401, %v407
    %411 = vrot.lane.b32.xlu0 %v409, 64
    %v412 = vpop.permute.xlu0 %411
    %v414 = vadd.f32 %v404, %v412
    %v415 = vtanh.pop %v414
    %417 = vrot.lane.b32.xlu0 %v415, 64
    %v418 = vpop.permute.xlu0 %417
    %v420 = vmul.f32 %v402, %v418
    %421 = vset.pattern.permute.xlu0 2
    %422 = vperm.xlu0 %421, %v44
    %v423 = vpop.permute.xlu0 %422
    %v425 = vmul.f32 %v423, %v52
    %v426 = vmul.f32 %v423, %v53
    %v427 = vadd.f32 %v425, %v60
    %v428 = vadd.f32 %v426, %v61
    %v429 = vadd.f32 %v427, %v371
    %v430 = vadd.f32 %v428, %v391
    %v431 = vmul.f32 %v429, 0.5
    %v432 = vmul.f32 %v430, 0.5
    %v433 = vtanh.pop %v431
    %v434 = vtanh.pop %v432
    %v435 = vmul.f32 %v433, 0.5
    %v436 = vmul.f32 %v434, 0.5
    %v437 = vadd.f32 %v435, 0.5
    %v438 = vadd.f32 %v436, 0.5
    %v439 = vtanh.pop %v430
    %v440 = vmul.f32 %v437, %v301
    %442 = vrot.lane.b32.xlu0 %v439, 64
    %v443 = vpop.permute.xlu0 %442
    %v445 = vmul.f32 %v437, %v443
    %447 = vrot.lane.b32.xlu0 %v445, 64
    %v448 = vpop.permute.xlu0 %447
    %v450 = vadd.f32 %v440, %v448
    %v451 = vtanh.pop %v450
    %453 = vrot.lane.b32.xlu0 %v451, 64
    %v454 = vpop.permute.xlu0 %453
    %v456 = vmul.f32 %v438, %v454
    %458 = vrot.lane.b32.xlu0 %v420, 64
    %v459 = vpop.permute.xlu0 %458
    %v461 = vsel %vm92, %v456, %v459
    %462 = vmatpush.msra.mxu0 %v154
    %463 = vmatpush.msra.mxu0 %v150
    %464 = vmatpush.msra.mxu0 %v146
    %465 = vmatpush.msra.mxu0 %v142
    %466 = vmatpush.msra.mxu0 %v138
    %467 = vmatpush.msra.mxu0 %v134
    %468 = vmatpush.msra.mxu0 %v130
    %469 = vmatpush.msra.mxu0 %v126
    %470 = vmatpush.msra.mxu0 %v122
    %471 = vmatpush.msra.mxu0 %v118
    %472 = vmatpush.msra.mxu0 %v114
    %473 = vmatpush.msra.mxu0 %v110
    %474 = vmatpush.msra.mxu0 %v106
    %475 = vmatpush.msra.mxu0 %v102
    %476 = vmatpush.msra.mxu0 %v98
    %477 = vmatpush.msra.mxu0 %v94
    %478 = vmatmul.f32.gmra.mxu0 %v461
    %v479 = vpop.f32.mrf.mxu0
    %v480 = vadd.f32 0.0, %v479
    %481 = vdwg.mxu0
    %482 = vmatpush.msra.mxu0 %v155
    %483 = vmatpush.msra.mxu0 %v151
    %484 = vmatpush.msra.mxu0 %v147
    %485 = vmatpush.msra.mxu0 %v143
    %486 = vmatpush.msra.mxu0 %v139
    %487 = vmatpush.msra.mxu0 %v135
    %488 = vmatpush.msra.mxu0 %v131
    %489 = vmatpush.msra.mxu0 %v127
    %490 = vmatpush.msra.mxu0 %v123
    %491 = vmatpush.msra.mxu0 %v119
    %492 = vmatpush.msra.mxu0 %v115
    %493 = vmatpush.msra.mxu0 %v111
    %494 = vmatpush.msra.mxu0 %v107
    %495 = vmatpush.msra.mxu0 %v103
    %496 = vmatpush.msra.mxu0 %v99
    %497 = vmatpush.msra.mxu0 %v95
    %498 = vmatmul.f32.gmra.mxu0 %v461
    %v499 = vpop.f32.mrf.mxu0
    %v500 = vadd.f32 0.0, %v499
    %501 = vdwg.mxu0
    %502 = vmatpush.msra.mxu0 %v156
    %503 = vmatpush.msra.mxu0 %v152
    %504 = vmatpush.msra.mxu0 %v148
    %505 = vmatpush.msra.mxu0 %v144
    %506 = vmatpush.msra.mxu0 %v140
    %507 = vmatpush.msra.mxu0 %v136
    %508 = vmatpush.msra.mxu0 %v132
    %509 = vmatpush.msra.mxu0 %v128
    %510 = vmatpush.msra.mxu0 %v124
    %511 = vmatpush.msra.mxu0 %v120
    %512 = vmatpush.msra.mxu0 %v116
    %513 = vmatpush.msra.mxu0 %v112
    %514 = vmatpush.msra.mxu0 %v108
    %515 = vmatpush.msra.mxu0 %v104
    %516 = vmatpush.msra.mxu0 %v100
    %517 = vmatpush.msra.mxu0 %v96
    %518 = vmatmul.f32.gmra.mxu0 %v461
    %v519 = vpop.f32.mrf.mxu0
    %v520 = vadd.f32 0.0, %v519
    %521 = vdwg.mxu0
    %522 = vmatpush.msra.mxu0 %v157
    %523 = vmatpush.msra.mxu0 %v153
    %524 = vmatpush.msra.mxu0 %v149
    %525 = vmatpush.msra.mxu0 %v145
    %526 = vmatpush.msra.mxu0 %v141
    %527 = vmatpush.msra.mxu0 %v137
    %528 = vmatpush.msra.mxu0 %v133
    %529 = vmatpush.msra.mxu0 %v129
    %530 = vmatpush.msra.mxu0 %v125
    %531 = vmatpush.msra.mxu0 %v121
    %532 = vmatpush.msra.mxu0 %v117
    %533 = vmatpush.msra.mxu0 %v113
    %534 = vmatpush.msra.mxu0 %v109
    %535 = vmatpush.msra.mxu0 %v105
    %536 = vmatpush.msra.mxu0 %v101
    %537 = vmatpush.msra.mxu0 %v97
    %538 = vmatmul.f32.gmra.mxu0 %v461
    %v539 = vpop.f32.mrf.mxu0
    %v540 = vadd.f32 0.0, %v539
    %541 = vdwg.mxu0
    %v542 = vadd.f32 %v480, %v240
    %v543 = vadd.f32 %v500, %v241
    %v544 = vmul.f32 %v542, 0.5
    %v545 = vmul.f32 %v543, 0.5
    %v546 = vtanh.pop %v544
    %v547 = vtanh.pop %v545
    %v548 = vmul.f32 %v546, 0.5
    %v549 = vmul.f32 %v547, 0.5
    %v550 = vadd.f32 %v548, 0.5
    %v551 = vadd.f32 %v549, 0.5
    %v552 = vtanh.pop %v543
    %v553 = vmul.f32 %v550, %v414
    %555 = vrot.lane.b32.xlu0 %v552, 64
    %v556 = vpop.permute.xlu0 %555
    %v558 = vmul.f32 %v550, %v556
    %560 = vrot.lane.b32.xlu0 %v558, 64
    %v561 = vpop.permute.xlu0 %560
    %v563 = vadd.f32 %v553, %v561
    %v564 = vtanh.pop %v563
    %566 = vrot.lane.b32.xlu0 %v564, 64
    %v567 = vpop.permute.xlu0 %566
    %v569 = vmul.f32 %v551, %v567
    %570 = vset.pattern.permute.xlu0 3
    %571 = vperm.xlu0 %570, %v44
    %v572 = vpop.permute.xlu0 %571
    %v574 = vmul.f32 %v572, %v52
    %v575 = vmul.f32 %v572, %v53
    %v576 = vadd.f32 %v574, %v60
    %v577 = vadd.f32 %v575, %v61
    %v578 = vadd.f32 %v576, %v520
    %v579 = vadd.f32 %v577, %v540
    %v580 = vmul.f32 %v578, 0.5
    %v581 = vmul.f32 %v579, 0.5
    %v582 = vtanh.pop %v580
    %v583 = vtanh.pop %v581
    %v584 = vmul.f32 %v582, 0.5
    %v585 = vmul.f32 %v583, 0.5
    %v586 = vadd.f32 %v584, 0.5
    %v587 = vadd.f32 %v585, 0.5
    %v588 = vtanh.pop %v579
    %v589 = vmul.f32 %v586, %v450
    %591 = vrot.lane.b32.xlu0 %v588, 64
    %v592 = vpop.permute.xlu0 %591
    %v594 = vmul.f32 %v586, %v592
    %596 = vrot.lane.b32.xlu0 %v594, 64
    %v597 = vpop.permute.xlu0 %596
    %v599 = vadd.f32 %v589, %v597
    %v600 = vtanh.pop %v599
    %602 = vrot.lane.b32.xlu0 %v600, 64
    %v603 = vpop.permute.xlu0 %602
    %v605 = vmul.f32 %v587, %v603
    %607 = vrot.lane.b32.xlu0 %v569, 64
    %v608 = vpop.permute.xlu0 %607
    %v610 = vsel %vm92, %v605, %v608
    %611 = vmatpush.msra.mxu0 %v154
    %612 = vmatpush.msra.mxu0 %v150
    %613 = vmatpush.msra.mxu0 %v146
    %614 = vmatpush.msra.mxu0 %v142
    %615 = vmatpush.msra.mxu0 %v138
    %616 = vmatpush.msra.mxu0 %v134
    %617 = vmatpush.msra.mxu0 %v130
    %618 = vmatpush.msra.mxu0 %v126
    %619 = vmatpush.msra.mxu0 %v122
    %620 = vmatpush.msra.mxu0 %v118
    %621 = vmatpush.msra.mxu0 %v114
    %622 = vmatpush.msra.mxu0 %v110
    %623 = vmatpush.msra.mxu0 %v106
    %624 = vmatpush.msra.mxu0 %v102
    %625 = vmatpush.msra.mxu0 %v98
    %626 = vmatpush.msra.mxu0 %v94
    %627 = vmatmul.f32.gmra.mxu0 %v610
    %v628 = vpop.f32.mrf.mxu0
    %v629 = vadd.f32 0.0, %v628
    %630 = vdwg.mxu0
    %631 = vmatpush.msra.mxu0 %v155
    %632 = vmatpush.msra.mxu0 %v151
    %633 = vmatpush.msra.mxu0 %v147
    %634 = vmatpush.msra.mxu0 %v143
    %635 = vmatpush.msra.mxu0 %v139
    %636 = vmatpush.msra.mxu0 %v135
    %637 = vmatpush.msra.mxu0 %v131
    %638 = vmatpush.msra.mxu0 %v127
    %639 = vmatpush.msra.mxu0 %v123
    %640 = vmatpush.msra.mxu0 %v119
    %641 = vmatpush.msra.mxu0 %v115
    %642 = vmatpush.msra.mxu0 %v111
    %643 = vmatpush.msra.mxu0 %v107
    %644 = vmatpush.msra.mxu0 %v103
    %645 = vmatpush.msra.mxu0 %v99
    %646 = vmatpush.msra.mxu0 %v95
    %647 = vmatmul.f32.gmra.mxu0 %v610
    %v648 = vpop.f32.mrf.mxu0
    %v649 = vadd.f32 0.0, %v648
    %650 = vdwg.mxu0
    %651 = vmatpush.msra.mxu0 %v156
    %652 = vmatpush.msra.mxu0 %v152
    %653 = vmatpush.msra.mxu0 %v148
    %654 = vmatpush.msra.mxu0 %v144
    %655 = vmatpush.msra.mxu0 %v140
    %656 = vmatpush.msra.mxu0 %v136
    %657 = vmatpush.msra.mxu0 %v132
    %658 = vmatpush.msra.mxu0 %v128
    %659 = vmatpush.msra.mxu0 %v124
    %660 = vmatpush.msra.mxu0 %v120
    %661 = vmatpush.msra.mxu0 %v116
    %662 = vmatpush.msra.mxu0 %v112
    %663 = vmatpush.msra.mxu0 %v108
    %664 = vmatpush.msra.mxu0 %v104
    %665 = vmatpush.msra.mxu0 %v100
    %666 = vmatpush.msra.mxu0 %v96
    %667 = vmatmul.f32.gmra.mxu0 %v610
    %v668 = vpop.f32.mrf.mxu0
    %v669 = vadd.f32 0.0, %v668
    %670 = vdwg.mxu0
    %671 = vmatpush.msra.mxu0 %v157
    %672 = vmatpush.msra.mxu0 %v153
    %673 = vmatpush.msra.mxu0 %v149
    %674 = vmatpush.msra.mxu0 %v145
    %675 = vmatpush.msra.mxu0 %v141
    %676 = vmatpush.msra.mxu0 %v137
    %677 = vmatpush.msra.mxu0 %v133
    %678 = vmatpush.msra.mxu0 %v129
    %679 = vmatpush.msra.mxu0 %v125
    %680 = vmatpush.msra.mxu0 %v121
    %681 = vmatpush.msra.mxu0 %v117
    %682 = vmatpush.msra.mxu0 %v113
    %683 = vmatpush.msra.mxu0 %v109
    %684 = vmatpush.msra.mxu0 %v105
    %685 = vmatpush.msra.mxu0 %v101
    %686 = vmatpush.msra.mxu0 %v97
    %687 = vmatmul.f32.gmra.mxu0 %v610
    %v688 = vpop.f32.mrf.mxu0
    %v689 = vadd.f32 0.0, %v688
    %690 = vdwg.mxu0
    %v691 = vadd.f32 %v629, %v240
    %v692 = vadd.f32 %v649, %v241
    %v693 = vmul.f32 %v691, 0.5
    %v694 = vmul.f32 %v692, 0.5
    %v695 = vtanh.pop %v693
    %v696 = vtanh.pop %v694
    %v697 = vmul.f32 %v695, 0.5
    %v698 = vmul.f32 %v696, 0.5
    %v699 = vadd.f32 %v697, 0.5
    %v700 = vadd.f32 %v698, 0.5
    %v701 = vtanh.pop %v692
    %v702 = vmul.f32 %v699, %v563
    %704 = vrot.lane.b32.xlu0 %v701, 64
    %v705 = vpop.permute.xlu0 %704
    %v707 = vmul.f32 %v699, %v705
    %709 = vrot.lane.b32.xlu0 %v707, 64
    %v710 = vpop.permute.xlu0 %709
    %v712 = vadd.f32 %v702, %v710
    %v713 = vtanh.pop %v712
    %715 = vrot.lane.b32.xlu0 %v713, 64
    %v716 = vpop.permute.xlu0 %715
    %v718 = vmul.f32 %v700, %v716
    %719 = vset.pattern.permute.xlu0 4
    %720 = vperm.xlu0 %719, %v44
    %v721 = vpop.permute.xlu0 %720
    %v723 = vmul.f32 %v721, %v52
    %v724 = vmul.f32 %v721, %v53
    %v725 = vadd.f32 %v723, %v60
    %v726 = vadd.f32 %v724, %v61
    %v727 = vadd.f32 %v725, %v669
    %v728 = vadd.f32 %v726, %v689
    %v729 = vmul.f32 %v727, 0.5
    %v730 = vmul.f32 %v728, 0.5
    %v731 = vtanh.pop %v729
    %v732 = vtanh.pop %v730
    %v733 = vmul.f32 %v731, 0.5
    %v734 = vmul.f32 %v732, 0.5
    %v735 = vadd.f32 %v733, 0.5
    %v736 = vadd.f32 %v734, 0.5
    %v737 = vtanh.pop %v728
    %v738 = vmul.f32 %v735, %v599
    %740 = vrot.lane.b32.xlu0 %v737, 64
    %v741 = vpop.permute.xlu0 %740
    %v743 = vmul.f32 %v735, %v741
    %745 = vrot.lane.b32.xlu0 %v743, 64
    %v746 = vpop.permute.xlu0 %745
    %v748 = vadd.f32 %v738, %v746
    %v749 = vtanh.pop %v748
    %751 = vrot.lane.b32.xlu0 %v749, 64
    %v752 = vpop.permute.xlu0 %751
    %v754 = vmul.f32 %v736, %v752
    %756 = vrot.lane.b32.xlu0 %v718, 64
    %v757 = vpop.permute.xlu0 %756
    %v759 = vsel %vm92, %v754, %v757
    %760 = vmatpush.msra.mxu0 %v154
    %761 = vmatpush.msra.mxu0 %v150
    %762 = vmatpush.msra.mxu0 %v146
    %763 = vmatpush.msra.mxu0 %v142
    %764 = vmatpush.msra.mxu0 %v138
    %765 = vmatpush.msra.mxu0 %v134
    %766 = vmatpush.msra.mxu0 %v130
    %767 = vmatpush.msra.mxu0 %v126
    %768 = vmatpush.msra.mxu0 %v122
    %769 = vmatpush.msra.mxu0 %v118
    %770 = vmatpush.msra.mxu0 %v114
    %771 = vmatpush.msra.mxu0 %v110
    %772 = vmatpush.msra.mxu0 %v106
    %773 = vmatpush.msra.mxu0 %v102
    %774 = vmatpush.msra.mxu0 %v98
    %775 = vmatpush.msra.mxu0 %v94
    %776 = vmatmul.f32.gmra.mxu0 %v759
    %v777 = vpop.f32.mrf.mxu0
    %v778 = vadd.f32 0.0, %v777
    %779 = vdwg.mxu0
    %780 = vmatpush.msra.mxu0 %v155
    %781 = vmatpush.msra.mxu0 %v151
    %782 = vmatpush.msra.mxu0 %v147
    %783 = vmatpush.msra.mxu0 %v143
    %784 = vmatpush.msra.mxu0 %v139
    %785 = vmatpush.msra.mxu0 %v135
    %786 = vmatpush.msra.mxu0 %v131
    %787 = vmatpush.msra.mxu0 %v127
    %788 = vmatpush.msra.mxu0 %v123
    %789 = vmatpush.msra.mxu0 %v119
    %790 = vmatpush.msra.mxu0 %v115
    %791 = vmatpush.msra.mxu0 %v111
    %792 = vmatpush.msra.mxu0 %v107
    %793 = vmatpush.msra.mxu0 %v103
    %794 = vmatpush.msra.mxu0 %v99
    %795 = vmatpush.msra.mxu0 %v95
    %796 = vmatmul.f32.gmra.mxu0 %v759
    %v797 = vpop.f32.mrf.mxu0
    %v798 = vadd.f32 0.0, %v797
    %799 = vdwg.mxu0
    %800 = vmatpush.msra.mxu0 %v156
    %801 = vmatpush.msra.mxu0 %v152
    %802 = vmatpush.msra.mxu0 %v148
    %803 = vmatpush.msra.mxu0 %v144
    %804 = vmatpush.msra.mxu0 %v140
    %805 = vmatpush.msra.mxu0 %v136
    %806 = vmatpush.msra.mxu0 %v132
    %807 = vmatpush.msra.mxu0 %v128
    %808 = vmatpush.msra.mxu0 %v124
    %809 = vmatpush.msra.mxu0 %v120
    %810 = vmatpush.msra.mxu0 %v116
    %811 = vmatpush.msra.mxu0 %v112
    %812 = vmatpush.msra.mxu0 %v108
    %813 = vmatpush.msra.mxu0 %v104
    %814 = vmatpush.msra.mxu0 %v100
    %815 = vmatpush.msra.mxu0 %v96
    %816 = vmatmul.f32.gmra.mxu0 %v759
    %v817 = vpop.f32.mrf.mxu0
    %v818 = vadd.f32 0.0, %v817
    %819 = vdwg.mxu0
    %820 = vmatpush.msra.mxu0 %v157
    %821 = vmatpush.msra.mxu0 %v153
    %822 = vmatpush.msra.mxu0 %v149
    %823 = vmatpush.msra.mxu0 %v145
    %824 = vmatpush.msra.mxu0 %v141
    %825 = vmatpush.msra.mxu0 %v137
    %826 = vmatpush.msra.mxu0 %v133
    %827 = vmatpush.msra.mxu0 %v129
    %828 = vmatpush.msra.mxu0 %v125
    %829 = vmatpush.msra.mxu0 %v121
    %830 = vmatpush.msra.mxu0 %v117
    %831 = vmatpush.msra.mxu0 %v113
    %832 = vmatpush.msra.mxu0 %v109
    %833 = vmatpush.msra.mxu0 %v105
    %834 = vmatpush.msra.mxu0 %v101
    %835 = vmatpush.msra.mxu0 %v97
    %836 = vmatmul.f32.gmra.mxu0 %v759
    %v837 = vpop.f32.mrf.mxu0
    %v838 = vadd.f32 0.0, %v837
    %839 = vdwg.mxu0
    %v840 = vadd.f32 %v778, %v240
    %v841 = vadd.f32 %v798, %v241
    %v842 = vmul.f32 %v840, 0.5
    %v843 = vmul.f32 %v841, 0.5
    %v844 = vtanh.pop %v842
    %v845 = vtanh.pop %v843
    %v846 = vmul.f32 %v844, 0.5
    %v847 = vmul.f32 %v845, 0.5
    %v848 = vadd.f32 %v846, 0.5
    %v849 = vadd.f32 %v847, 0.5
    %v850 = vtanh.pop %v841
    %v851 = vmul.f32 %v848, %v712
    %853 = vrot.lane.b32.xlu0 %v850, 64
    %v854 = vpop.permute.xlu0 %853
    %v856 = vmul.f32 %v848, %v854
    %858 = vrot.lane.b32.xlu0 %v856, 64
    %v859 = vpop.permute.xlu0 %858
    %v861 = vadd.f32 %v851, %v859
    %v862 = vtanh.pop %v861
    %864 = vrot.lane.b32.xlu0 %v862, 64
    %v865 = vpop.permute.xlu0 %864
    %v867 = vmul.f32 %v849, %v865
    %868 = vset.pattern.permute.xlu0 5
    %869 = vperm.xlu0 %868, %v44
    %v870 = vpop.permute.xlu0 %869
    %v872 = vmul.f32 %v870, %v52
    %v873 = vmul.f32 %v870, %v53
    %v874 = vadd.f32 %v872, %v60
    %v875 = vadd.f32 %v873, %v61
    %v876 = vadd.f32 %v874, %v818
    %v877 = vadd.f32 %v875, %v838
    %v878 = vmul.f32 %v876, 0.5
    %v879 = vmul.f32 %v877, 0.5
    %v880 = vtanh.pop %v878
    %v881 = vtanh.pop %v879
    %v882 = vmul.f32 %v880, 0.5
    %v883 = vmul.f32 %v881, 0.5
    %v884 = vadd.f32 %v882, 0.5
    %v885 = vadd.f32 %v883, 0.5
    %v886 = vtanh.pop %v877
    %v887 = vmul.f32 %v884, %v748
    %889 = vrot.lane.b32.xlu0 %v886, 64
    %v890 = vpop.permute.xlu0 %889
    %v892 = vmul.f32 %v884, %v890
    %894 = vrot.lane.b32.xlu0 %v892, 64
    %v895 = vpop.permute.xlu0 %894
    %v897 = vadd.f32 %v887, %v895
    %v898 = vtanh.pop %v897
    %900 = vrot.lane.b32.xlu0 %v898, 64
    %v901 = vpop.permute.xlu0 %900
    %v903 = vmul.f32 %v885, %v901
    %905 = vrot.lane.b32.xlu0 %v867, 64
    %v906 = vpop.permute.xlu0 %905
    %v908 = vsel %vm92, %v903, %v906
    %909 = vmatpush.msra.mxu0 %v154
    %910 = vmatpush.msra.mxu0 %v150
    %911 = vmatpush.msra.mxu0 %v146
    %912 = vmatpush.msra.mxu0 %v142
    %913 = vmatpush.msra.mxu0 %v138
    %914 = vmatpush.msra.mxu0 %v134
    %915 = vmatpush.msra.mxu0 %v130
    %916 = vmatpush.msra.mxu0 %v126
    %917 = vmatpush.msra.mxu0 %v122
    %918 = vmatpush.msra.mxu0 %v118
    %919 = vmatpush.msra.mxu0 %v114
    %920 = vmatpush.msra.mxu0 %v110
    %921 = vmatpush.msra.mxu0 %v106
    %922 = vmatpush.msra.mxu0 %v102
    %923 = vmatpush.msra.mxu0 %v98
    %924 = vmatpush.msra.mxu0 %v94
    %925 = vmatmul.f32.gmra.mxu0 %v908
    %v926 = vpop.f32.mrf.mxu0
    %v927 = vadd.f32 0.0, %v926
    %928 = vdwg.mxu0
    %929 = vmatpush.msra.mxu0 %v155
    %930 = vmatpush.msra.mxu0 %v151
    %931 = vmatpush.msra.mxu0 %v147
    %932 = vmatpush.msra.mxu0 %v143
    %933 = vmatpush.msra.mxu0 %v139
    %934 = vmatpush.msra.mxu0 %v135
    %935 = vmatpush.msra.mxu0 %v131
    %936 = vmatpush.msra.mxu0 %v127
    %937 = vmatpush.msra.mxu0 %v123
    %938 = vmatpush.msra.mxu0 %v119
    %939 = vmatpush.msra.mxu0 %v115
    %940 = vmatpush.msra.mxu0 %v111
    %941 = vmatpush.msra.mxu0 %v107
    %942 = vmatpush.msra.mxu0 %v103
    %943 = vmatpush.msra.mxu0 %v99
    %944 = vmatpush.msra.mxu0 %v95
    %945 = vmatmul.f32.gmra.mxu0 %v908
    %v946 = vpop.f32.mrf.mxu0
    %v947 = vadd.f32 0.0, %v946
    %948 = vdwg.mxu0
    %949 = vmatpush.msra.mxu0 %v156
    %950 = vmatpush.msra.mxu0 %v152
    %951 = vmatpush.msra.mxu0 %v148
    %952 = vmatpush.msra.mxu0 %v144
    %953 = vmatpush.msra.mxu0 %v140
    %954 = vmatpush.msra.mxu0 %v136
    %955 = vmatpush.msra.mxu0 %v132
    %956 = vmatpush.msra.mxu0 %v128
    %957 = vmatpush.msra.mxu0 %v124
    %958 = vmatpush.msra.mxu0 %v120
    %959 = vmatpush.msra.mxu0 %v116
    %960 = vmatpush.msra.mxu0 %v112
    %961 = vmatpush.msra.mxu0 %v108
    %962 = vmatpush.msra.mxu0 %v104
    %963 = vmatpush.msra.mxu0 %v100
    %964 = vmatpush.msra.mxu0 %v96
    %965 = vmatmul.f32.gmra.mxu0 %v908
    %v966 = vpop.f32.mrf.mxu0
    %v967 = vadd.f32 0.0, %v966
    %968 = vdwg.mxu0
    %969 = vmatpush.msra.mxu0 %v157
    %970 = vmatpush.msra.mxu0 %v153
    %971 = vmatpush.msra.mxu0 %v149
    %972 = vmatpush.msra.mxu0 %v145
    %973 = vmatpush.msra.mxu0 %v141
    %974 = vmatpush.msra.mxu0 %v137
    %975 = vmatpush.msra.mxu0 %v133
    %976 = vmatpush.msra.mxu0 %v129
    %977 = vmatpush.msra.mxu0 %v125
    %978 = vmatpush.msra.mxu0 %v121
    %979 = vmatpush.msra.mxu0 %v117
    %980 = vmatpush.msra.mxu0 %v113
    %981 = vmatpush.msra.mxu0 %v109
    %982 = vmatpush.msra.mxu0 %v105
    %983 = vmatpush.msra.mxu0 %v101
    %984 = vmatpush.msra.mxu0 %v97
    %985 = vmatmul.f32.gmra.mxu0 %v908
    %v986 = vpop.f32.mrf.mxu0
    %v987 = vadd.f32 0.0, %v986
    %988 = vdwg.mxu0
    %v989 = vadd.f32 %v927, %v240
    %v990 = vadd.f32 %v947, %v241
    %v991 = vmul.f32 %v989, 0.5
    %v992 = vmul.f32 %v990, 0.5
    %v993 = vtanh.pop %v991
    %v994 = vtanh.pop %v992
    %v995 = vmul.f32 %v993, 0.5
    %v996 = vmul.f32 %v994, 0.5
    %v997 = vadd.f32 %v995, 0.5
    %v998 = vadd.f32 %v996, 0.5
    %v999 = vtanh.pop %v990
    %v1000 = vmul.f32 %v997, %v861
    %1002 = vrot.lane.b32.xlu0 %v999, 64
    %v1003 = vpop.permute.xlu0 %1002
    %v1005 = vmul.f32 %v997, %v1003
    %1007 = vrot.lane.b32.xlu0 %v1005, 64
    %v1008 = vpop.permute.xlu0 %1007
    %v1010 = vadd.f32 %v1000, %v1008
    %v1011 = vtanh.pop %v1010
    %1013 = vrot.lane.b32.xlu0 %v1011, 64
    %v1014 = vpop.permute.xlu0 %1013
    %v1016 = vmul.f32 %v998, %v1014
    %1017 = vset.pattern.permute.xlu0 6
    %1018 = vperm.xlu0 %1017, %v44
    %v1019 = vpop.permute.xlu0 %1018
    %v1021 = vmul.f32 %v1019, %v52
    %v1022 = vmul.f32 %v1019, %v53
    %v1023 = vadd.f32 %v1021, %v60
    %v1024 = vadd.f32 %v1022, %v61
    %v1025 = vadd.f32 %v1023, %v967
    %v1026 = vadd.f32 %v1024, %v987
    %v1027 = vmul.f32 %v1025, 0.5
    %v1028 = vmul.f32 %v1026, 0.5
    %v1029 = vtanh.pop %v1027
    %v1030 = vtanh.pop %v1028
    %v1031 = vmul.f32 %v1029, 0.5
    %v1032 = vmul.f32 %v1030, 0.5
    %v1033 = vadd.f32 %v1031, 0.5
    %v1034 = vadd.f32 %v1032, 0.5
    %v1035 = vtanh.pop %v1026
    %v1036 = vmul.f32 %v1033, %v897
    %1038 = vrot.lane.b32.xlu0 %v1035, 64
    %v1039 = vpop.permute.xlu0 %1038
    %v1041 = vmul.f32 %v1033, %v1039
    %1043 = vrot.lane.b32.xlu0 %v1041, 64
    %v1044 = vpop.permute.xlu0 %1043
    %v1046 = vadd.f32 %v1036, %v1044
    %v1047 = vtanh.pop %v1046
    %1049 = vrot.lane.b32.xlu0 %v1047, 64
    %v1050 = vpop.permute.xlu0 %1049
    %v1052 = vmul.f32 %v1034, %v1050
    %1054 = vrot.lane.b32.xlu0 %v1016, 64
    %v1055 = vpop.permute.xlu0 %1054
    %v1057 = vsel %vm92, %v1052, %v1055
    %1058 = vmatpush.msra.mxu0 %v154
    %1059 = vmatpush.msra.mxu0 %v150
    %1060 = vmatpush.msra.mxu0 %v146
    %1061 = vmatpush.msra.mxu0 %v142
    %1062 = vmatpush.msra.mxu0 %v138
    %1063 = vmatpush.msra.mxu0 %v134
    %1064 = vmatpush.msra.mxu0 %v130
    %1065 = vmatpush.msra.mxu0 %v126
    %1066 = vmatpush.msra.mxu0 %v122
    %1067 = vmatpush.msra.mxu0 %v118
    %1068 = vmatpush.msra.mxu0 %v114
    %1069 = vmatpush.msra.mxu0 %v110
    %1070 = vmatpush.msra.mxu0 %v106
    %1071 = vmatpush.msra.mxu0 %v102
    %1072 = vmatpush.msra.mxu0 %v98
    %1073 = vmatpush.msra.mxu0 %v94
    %1074 = vmatmul.f32.gmra.mxu0 %v1057
    %v1075 = vpop.f32.mrf.mxu0
    %v1076 = vadd.f32 0.0, %v1075
    %1077 = vdwg.mxu0
    %1078 = vmatpush.msra.mxu0 %v155
    %1079 = vmatpush.msra.mxu0 %v151
    %1080 = vmatpush.msra.mxu0 %v147
    %1081 = vmatpush.msra.mxu0 %v143
    %1082 = vmatpush.msra.mxu0 %v139
    %1083 = vmatpush.msra.mxu0 %v135
    %1084 = vmatpush.msra.mxu0 %v131
    %1085 = vmatpush.msra.mxu0 %v127
    %1086 = vmatpush.msra.mxu0 %v123
    %1087 = vmatpush.msra.mxu0 %v119
    %1088 = vmatpush.msra.mxu0 %v115
    %1089 = vmatpush.msra.mxu0 %v111
    %1090 = vmatpush.msra.mxu0 %v107
    %1091 = vmatpush.msra.mxu0 %v103
    %1092 = vmatpush.msra.mxu0 %v99
    %1093 = vmatpush.msra.mxu0 %v95
    %1094 = vmatmul.f32.gmra.mxu0 %v1057
    %v1095 = vpop.f32.mrf.mxu0
    %v1096 = vadd.f32 0.0, %v1095
    %1097 = vdwg.mxu0
    %1098 = vmatpush.msra.mxu0 %v156
    %1099 = vmatpush.msra.mxu0 %v152
    %1100 = vmatpush.msra.mxu0 %v148
    %1101 = vmatpush.msra.mxu0 %v144
    %1102 = vmatpush.msra.mxu0 %v140
    %1103 = vmatpush.msra.mxu0 %v136
    %1104 = vmatpush.msra.mxu0 %v132
    %1105 = vmatpush.msra.mxu0 %v128
    %1106 = vmatpush.msra.mxu0 %v124
    %1107 = vmatpush.msra.mxu0 %v120
    %1108 = vmatpush.msra.mxu0 %v116
    %1109 = vmatpush.msra.mxu0 %v112
    %1110 = vmatpush.msra.mxu0 %v108
    %1111 = vmatpush.msra.mxu0 %v104
    %1112 = vmatpush.msra.mxu0 %v100
    %1113 = vmatpush.msra.mxu0 %v96
    %1114 = vmatmul.f32.gmra.mxu0 %v1057
    %v1115 = vpop.f32.mrf.mxu0
    %v1116 = vadd.f32 0.0, %v1115
    %1117 = vdwg.mxu0
    %1118 = vmatpush.msra.mxu0 %v157
    %1119 = vmatpush.msra.mxu0 %v153
    %1120 = vmatpush.msra.mxu0 %v149
    %1121 = vmatpush.msra.mxu0 %v145
    %1122 = vmatpush.msra.mxu0 %v141
    %1123 = vmatpush.msra.mxu0 %v137
    %1124 = vmatpush.msra.mxu0 %v133
    %1125 = vmatpush.msra.mxu0 %v129
    %1126 = vmatpush.msra.mxu0 %v125
    %1127 = vmatpush.msra.mxu0 %v121
    %1128 = vmatpush.msra.mxu0 %v117
    %1129 = vmatpush.msra.mxu0 %v113
    %1130 = vmatpush.msra.mxu0 %v109
    %1131 = vmatpush.msra.mxu0 %v105
    %1132 = vmatpush.msra.mxu0 %v101
    %1133 = vmatpush.msra.mxu0 %v97
    %1134 = vmatmul.f32.gmra.mxu0 %v1057
    %v1135 = vpop.f32.mrf.mxu0
    %v1136 = vadd.f32 0.0, %v1135
    %1137 = vdwg.mxu0
    %v1138 = vadd.f32 %v1076, %v240
    %v1139 = vadd.f32 %v1096, %v241
    %v1140 = vmul.f32 %v1138, 0.5
    %v1141 = vmul.f32 %v1139, 0.5
    %v1142 = vtanh.pop %v1140
    %v1143 = vtanh.pop %v1141
    %v1144 = vmul.f32 %v1142, 0.5
    %v1145 = vmul.f32 %v1143, 0.5
    %v1146 = vadd.f32 %v1144, 0.5
    %v1147 = vadd.f32 %v1145, 0.5
    %v1148 = vtanh.pop %v1139
    %v1149 = vmul.f32 %v1146, %v1010
    %1151 = vrot.lane.b32.xlu0 %v1148, 64
    %v1152 = vpop.permute.xlu0 %1151
    %v1154 = vmul.f32 %v1146, %v1152
    %1156 = vrot.lane.b32.xlu0 %v1154, 64
    %v1157 = vpop.permute.xlu0 %1156
    %v1159 = vadd.f32 %v1149, %v1157
    %v1160 = vtanh.pop %v1159
    %1162 = vrot.lane.b32.xlu0 %v1160, 64
    %v1163 = vpop.permute.xlu0 %1162
    %v1165 = vmul.f32 %v1147, %v1163
    %1166 = vset.pattern.permute.xlu0 7
    %1167 = vperm.xlu0 %1166, %v44
    %v1168 = vpop.permute.xlu0 %1167
    %v1170 = vmul.f32 %v1168, %v52
    %v1171 = vmul.f32 %v1168, %v53
    %v1172 = vadd.f32 %v1170, %v60
    %v1173 = vadd.f32 %v1171, %v61
    %v1174 = vadd.f32 %v1172, %v1116
    %v1175 = vadd.f32 %v1173, %v1136
    %v1176 = vmul.f32 %v1174, 0.5
    %v1177 = vmul.f32 %v1175, 0.5
    %v1178 = vtanh.pop %v1176
    %v1179 = vtanh.pop %v1177
    %v1180 = vmul.f32 %v1178, 0.5
    %v1181 = vmul.f32 %v1179, 0.5
    %v1182 = vadd.f32 %v1180, 0.5
    %v1183 = vadd.f32 %v1181, 0.5
    %v1184 = vtanh.pop %v1175
    %v1185 = vmul.f32 %v1182, %v1046
    %1187 = vrot.lane.b32.xlu0 %v1184, 64
    %v1188 = vpop.permute.xlu0 %1187
    %v1190 = vmul.f32 %v1182, %v1188
    %1192 = vrot.lane.b32.xlu0 %v1190, 64
    %v1193 = vpop.permute.xlu0 %1192
    %v1195 = vadd.f32 %v1185, %v1193
    %v1196 = vtanh.pop %v1195
    %1198 = vrot.lane.b32.xlu0 %v1196, 64
    %v1199 = vpop.permute.xlu0 %1198
    %v1201 = vmul.f32 %v1183, %v1199
    %1203 = vrot.lane.b32.xlu0 %v1165, 64
    %v1204 = vpop.permute.xlu0 %1203
    %v1206 = vsel %vm92, %v1201, %v1204
    %1207 = vmatpush.msra.mxu0 %v154
    %1208 = vmatpush.msra.mxu0 %v150
    %1209 = vmatpush.msra.mxu0 %v146
    %1210 = vmatpush.msra.mxu0 %v142
    %1211 = vmatpush.msra.mxu0 %v138
    %1212 = vmatpush.msra.mxu0 %v134
    %1213 = vmatpush.msra.mxu0 %v130
    %1214 = vmatpush.msra.mxu0 %v126
    %1215 = vmatpush.msra.mxu0 %v122
    %1216 = vmatpush.msra.mxu0 %v118
    %1217 = vmatpush.msra.mxu0 %v114
    %1218 = vmatpush.msra.mxu0 %v110
    %1219 = vmatpush.msra.mxu0 %v106
    %1220 = vmatpush.msra.mxu0 %v102
    %1221 = vmatpush.msra.mxu0 %v98
    %1222 = vmatpush.msra.mxu0 %v94
    %1223 = vmatmul.f32.gmra.mxu0 %v1206
    %v1224 = vpop.f32.mrf.mxu0
    %v1225 = vadd.f32 0.0, %v1224
    %1226 = vdwg.mxu0
    %1227 = vmatpush.msra.mxu0 %v155
    %1228 = vmatpush.msra.mxu0 %v151
    %1229 = vmatpush.msra.mxu0 %v147
    %1230 = vmatpush.msra.mxu0 %v143
    %1231 = vmatpush.msra.mxu0 %v139
    %1232 = vmatpush.msra.mxu0 %v135
    %1233 = vmatpush.msra.mxu0 %v131
    %1234 = vmatpush.msra.mxu0 %v127
    %1235 = vmatpush.msra.mxu0 %v123
    %1236 = vmatpush.msra.mxu0 %v119
    %1237 = vmatpush.msra.mxu0 %v115
    %1238 = vmatpush.msra.mxu0 %v111
    %1239 = vmatpush.msra.mxu0 %v107
    %1240 = vmatpush.msra.mxu0 %v103
    %1241 = vmatpush.msra.mxu0 %v99
    %1242 = vmatpush.msra.mxu0 %v95
    %1243 = vmatmul.f32.gmra.mxu0 %v1206
    %v1244 = vpop.f32.mrf.mxu0
    %v1245 = vadd.f32 0.0, %v1244
    %1246 = vdwg.mxu0
    %v1247 = vadd.f32 %v1225, %v240
    %v1248 = vadd.f32 %v1245, %v241
    %v1249 = vmul.f32 %v1247, 0.5
    %v1250 = vmul.f32 %v1248, 0.5
    %v1251 = vtanh.pop %v1249
    %v1252 = vtanh.pop %v1250
    %v1253 = vmul.f32 %v1251, 0.5
    %v1254 = vmul.f32 %v1252, 0.5
    %v1255 = vadd.f32 %v1253, 0.5
    %v1256 = vadd.f32 %v1254, 0.5
    %v1257 = vtanh.pop %v1248
    %v1258 = vmul.f32 %v1255, %v1159
    %1260 = vrot.lane.b32.xlu0 %v1257, 64
    %v1261 = vpop.permute.xlu0 %1260
    %v1263 = vmul.f32 %v1255, %v1261
    %1265 = vrot.lane.b32.xlu0 %v1263, 64
    %v1266 = vpop.permute.xlu0 %1265
    %v1268 = vadd.f32 %v1258, %v1266
    %v1269 = vtanh.pop %v1268
    %1271 = vrot.lane.b32.xlu0 %v1269, 64
    %v1272 = vpop.permute.xlu0 %1271
    %v1274 = vmul.f32 %v1256, %v1272
    %v1275 = vld [vmem:[%s5] sm:$0x1]
    %v1277 = vperm.slane %v1275, 0
    %v1279 = vmul.f32 %v1274, %v1277
    %v1280 = vsel %vm92, %v1279, 0.0
    %1281 = vadd.xlane.f32.xlu0 %v1280
    %v1282 = vpop.xlane.xlu0 %1281
    %v1283 = vld [vmem:[#allocation2] sm:$0x1]
    %v1285 = vperm.slane %v1283, 0
    %v1287 = vadd.f32 %v1282, %v1285
    %1289 = vrot.lane.b32.xlu0 %v1287, 7
    %v1290 = vpop.permute.xlu0 %1289
    %v1292 = vadd.f32 %v44, %v1290
    %1294 = vrot.lane.b32.xlu0 %v1292, 121
    %v1295 = vpop.permute.xlu0 %1294
    %vm1297 = vcmask 7168
    %1298 = vst.msk [vmem:[%s7] sm:$0xff] %vm1297, %v1295
    // Predicated region
    $region34: #{lstm_predictor.1} parent=1 // pred_check
      _
    $region35: #{lstm_predictor.1} parent=1 // pred_check_branch
      %1300 = sbr.rel (0) target = $region37
    $region36: #{lstm_predictor.1} parent=1 // pred_region
      _
    $region37: #{lstm_predictor.1} parent=1 // pred_fallthru
      _
    // Predicated region
    $region38: #{lstm_predictor.1} parent=1 // pred_check
      _
    $region39: #{lstm_predictor.1} parent=1 // pred_check_branch
      %1302 = sbr.rel (0) target = $region41
    $region40: #{lstm_predictor.1} parent=1 // pred_region
      _
    $region41: #{lstm_predictor.1} parent=1 // pred_fallthru
      _
    %1303 = vsyncpa [#allocation4], 1

</llo_original>
